<compile_context>
chip_gen: v5e
topology: v5e:2x2
jax: 0.10.0
libtpu: 0.0.40
codegen_flags: <defaults>
</compile_context>

<pallas_src>
import math

import jax
import jax.numpy as jnp
from jax.experimental import pallas as pl
from jax.experimental.pallas import tpu as pltpu


def _make_lstm_pred_kernel(T, Hp):
    def kernel(x_ref, w_ih_t_ref, w_hh_t_ref, b_ref, w_out_ref, b_out_ref, out_ref):
        # Input projection for all timesteps at once on the MXU (single matmul, off the
        # per-step serial chain): (T, in) @ (in, 4Hp) + b -> (T, 4Hp) f32.
        gates_x = (
            jnp.dot(x_ref[...], w_ih_t_ref[...], preferred_element_type=jnp.float32)
            + b_ref[...]
        )

        def sig(v):
            # sigmoid(x) = 0.5 * (1 + tanh(0.5 * x)) : one EUP op + two VPU ops instead
            # of exp + add + divide (two dependent EUP round-trips per gate).
            return 0.5 * (jnp.tanh(0.5 * v) + 1.0)

        # self.hidden = init_hidden() -> zeros for both h and c.
        h = jnp.zeros((1, Hp), jnp.float32)
        c = jnp.zeros((1, Hp), jnp.float32)

        # Static unroll: T is a small compile-time constant, so every slice below is
        # static and the scheduler sees across steps.
        for t in range(T):
            # Recurrent matmul in bf16 (MXU-native) with f32 accumulation.  The weight is
            # read from the ref inside the loop so no register-file-sized value is kept
            # live across the whole unrolled region.
            g = gates_x[t:t + 1, :] + jnp.dot(
                h.astype(jnp.bfloat16), w_hh_t_ref[...],
                preferred_element_type=jnp.float32)            # (1, 4Hp) f32
            # Each gate slice is one full 128-lane-aligned vreg (Hp % 128 == 0),
            # PyTorch gate order [i, f, g, o].
            i_g = sig(g[:, 0 * Hp:1 * Hp])
            f_g = sig(g[:, 1 * Hp:2 * Hp])
            c_g = jnp.tanh(g[:, 2 * Hp:3 * Hp])
            o_g = sig(g[:, 3 * Hp:4 * Hp])
            c = f_g * c + i_g * c_g
            h = o_g * jnp.tanh(c)

            # hidden2out for this step: VPU multiply + XLU cross-lane reduce + tiny store.
            # Does not feed the recurrence, so it hides under the next step's MXU latency
            # (padded lanes of h are exactly 0 and contribute nothing).
            out_ref[t:t + 1, :] = (
                jnp.sum(h * w_out_ref[...], axis=-1, keepdims=True)   # (1, 1)
                + b_out_ref[...]
            )

    return kernel


def lstm_pred(x, w_ih, w_hh, b_ih, b_hh, w_out, b_out):
    """x: (T, input_size); weights in PyTorch layout:
       w_ih: (4H, input_size), w_hh: (4H, H), b_ih/b_hh: (4H,),
       w_out: (1, H), b_out: (1,). Returns (T, 1) float32."""
    T, _ = x.shape
    H = w_hh.shape[1]
    Hp = max(128, ((H + 127) // 128) * 128)   # pad hidden dim to whole 128-lane vregs

    def pad_gates(w, last_pad):
        # w: (4H, X) with gate blocks [i, f, g, o] stacked along rows.
        w4 = jnp.asarray(w, jnp.float32).reshape(4, H, -1)
        w4 = jnp.pad(w4, ((0, 0), (0, Hp - H), (0, last_pad)))
        return w4.reshape(4 * Hp, -1)

    w_ih_t = pad_gates(w_ih, 0).T                               # (input_size, 4Hp) f32
    # Recurrent weight in bf16 (MXU-native); zero padding is exact in bf16.
    w_hh_t = pad_gates(w_hh, Hp - H).T.astype(jnp.bfloat16)     # (Hp, 4Hp) bf16
    b4 = (jnp.asarray(b_ih, jnp.float32)
          + jnp.asarray(b_hh, jnp.float32)).reshape(4, H)
    b = jnp.pad(b4, ((0, 0), (0, Hp - H))).reshape(1, 4 * Hp)
    w_out_row = jnp.pad(jnp.asarray(w_out, jnp.float32).reshape(1, H),
                        ((0, 0), (0, Hp - H)))                  # (1, Hp)
    b_out_r = jnp.asarray(b_out, jnp.float32).reshape(1, 1)

    vmem = pl.BlockSpec(memory_space=pltpu.MemorySpace.VMEM)
    return pl.pallas_call(
        _make_lstm_pred_kernel(T, Hp),
        out_shape=jax.ShapeDtypeStruct((T, 1), jnp.float32),
        in_specs=[vmem] * 6,
        out_specs=vmem,
    )(jnp.asarray(x, jnp.float32), w_ih_t, w_hh_t, b, w_out_row, b_out_r)


def lstm_pred_ref(x, w_ih, w_hh, b_ih, b_hh, w_out, b_out):
    """Pure-JAX f32 reference mirroring torch.nn.LSTM + Linear semantics."""
    T, _ = x.shape
    H = w_hh.shape[1]
    h = jnp.zeros((1, H), jnp.float32)
    c = jnp.zeros((1, H), jnp.float32)
    hs = []
    for t in range(T):
        g = x[t:t + 1] @ w_ih.T + b_ih + h @ w_hh.T + b_hh
        i_g = jax.nn.sigmoid(g[:, 0:H])
        f_g = jax.nn.sigmoid(g[:, H:2 * H])
        c_g = jnp.tanh(g[:, 2 * H:3 * H])
        o_g = jax.nn.sigmoid(g[:, 3 * H:4 * H])
        c = f_g * c + i_g * c_g
        h = o_g * jnp.tanh(c)
        hs.append(h)
    hseq = jnp.concatenate(hs, axis=0)                     # (T, H)
    return hseq @ w_out.T + b_out                          # (T, 1)


if __name__ == "__main__":
    T = 8            # sequence length
    INPUT_SIZE = 16  # input_size
    H = 32           # hidden_dim

    key = jax.random.PRNGKey(0)
    ks = jax.random.split(key, 8)
    k_init = 1.0 / math.sqrt(H)  # PyTorch default init range for LSTM / Linear

    x = jax.random.normal(ks[0], (T, INPUT_SIZE), jnp.float32)
    w_ih = jax.random.uniform(ks[1], (4 * H, INPUT_SIZE), jnp.float32, -k_init, k_init)
    w_hh = jax.random.uniform(ks[2], (4 * H, H), jnp.float32, -k_init, k_init)
    b_ih = jax.random.uniform(ks[3], (4 * H,), jnp.float32, -k_init, k_init)
    b_hh = jax.random.uniform(ks[4], (4 * H,), jnp.float32, -k_init, k_init)
    w_out = jax.random.uniform(ks[5], (1, H), jnp.float32, -k_init, k_init)
    b_out = jax.random.uniform(ks[6], (1,), jnp.float32, -k_init, k_init)

    out = lstm_pred(x, w_ih, w_hh, b_ih, b_hh, w_out, b_out)
    out = jax.block_until_ready(out)

    ref = lstm_pred_ref(x, w_ih, w_hh, b_ih, b_hh, w_out, b_out)
    assert out.shape == (T, 1), out.shape
    # Tolerance widened vs the pure-f32 variant: the recurrent matmul now uses bf16 MXU
    # inputs with f32 accumulation (per perf review); the input projection, cell state
    # and all elementwise gate math remain f32.
    assert jnp.max(jnp.abs(out - ref)) < 5e-3, "mismatch vs reference"

    print("KERNEL_OK")
</pallas_src>

<mosaic_0001>
module attributes {stable_mosaic.version = 11 : i64} {
  func.func @kernel(%arg0: memref<8x16xf32, #tpu.memory_space<vmem>>, %arg1: memref<16x512xf32, #tpu.memory_space<vmem>>, %arg2: memref<128x512xbf16, #tpu.memory_space<vmem>>, %arg3: memref<1x512xf32, #tpu.memory_space<vmem>>, %arg4: memref<1x128xf32, #tpu.memory_space<vmem>>, %arg5: memref<1x1xf32, #tpu.memory_space<vmem>>, %arg6: memref<8x1xf32, #tpu.memory_space<vmem>>) attributes {dimension_semantics = [], scalar_prefetch = 0 : i64, scratch_operands = 0 : i64, tpu.core_type = #tpu.core_type<tc>} {
    %c0 = arith.constant 0 : index
    %c0_0 = arith.constant 0 : index
    %0 = vector.load %arg0[%c0, %c0_0] : memref<8x16xf32, #tpu.memory_space<vmem>>, vector<8x16xf32>
    %c0_1 = arith.constant 0 : index
    %c0_2 = arith.constant 0 : index
    %1 = vector.load %arg1[%c0_1, %c0_2] : memref<16x512xf32, #tpu.memory_space<vmem>>, vector<16x512xf32>
    %cst = arith.constant dense<0.000000e+00> : vector<8x512xf32>
    %2 = tpu.matmul %0, %1, %cst {dimension_numbers = #tpu.dot_dimension_numbers<[1], [0], [0], [1], [0, 0, 1, 1], [], []>} : vector<8x16xf32>, vector<16x512xf32>, vector<8x512xf32> -> vector<8x512xf32>
    %c0_3 = arith.constant 0 : index
    %c0_4 = arith.constant 0 : index
    %3 = vector.load %arg3[%c0_3, %c0_4] : memref<1x512xf32, #tpu.memory_space<vmem>>, vector<1x512xf32>
    %4 = vector.broadcast %3 : vector<1x512xf32> to vector<8x512xf32>
    %5 = arith.addf %2, %4 : vector<8x512xf32>
    %cst_5 = arith.constant 0.000000e+00 : f32
    %6 = vector.broadcast %cst_5 : f32 to vector<1x128xf32>
    %cst_6 = arith.constant 0.000000e+00 : f32
    %7 = vector.broadcast %cst_6 : f32 to vector<1x128xf32>
    %8 = vector.extract_strided_slice %5 {offsets = [0, 0], sizes = [1, 512], strides = [1, 1]} : vector<8x512xf32> to vector<1x512xf32>
    %9 = arith.truncf %6 : vector<1x128xf32> to vector<1x128xbf16>
    %c0_7 = arith.constant 0 : index
    %c0_8 = arith.constant 0 : index
    %10 = vector.load %arg2[%c0_7, %c0_8] : memref<128x512xbf16, #tpu.memory_space<vmem>>, vector<128x512xbf16>
    %cst_9 = arith.constant dense<0.000000e+00> : vector<1x512xf32>
    %11 = tpu.matmul %9, %10, %cst_9 {dimension_numbers = #tpu.dot_dimension_numbers<[1], [0], [0], [1], [0, 0, 1, 1], [], []>} : vector<1x128xbf16>, vector<128x512xbf16>, vector<1x512xf32> -> vector<1x512xf32>
    %12 = arith.addf %8, %11 : vector<1x512xf32>
    %13 = vector.extract_strided_slice %12 {offsets = [0, 0], sizes = [1, 128], strides = [1, 1]} : vector<1x512xf32> to vector<1x128xf32>
    %cst_10 = arith.constant 5.000000e-01 : f32
    %14 = vector.broadcast %cst_10 : f32 to vector<1x128xf32>
    %15 = arith.mulf %14, %13 : vector<1x128xf32>
    %16 = math.tanh %15 : vector<1x128xf32>
    %cst_11 = arith.constant 1.000000e+00 : f32
    %17 = vector.broadcast %cst_11 : f32 to vector<1x128xf32>
    %18 = arith.addf %16, %17 : vector<1x128xf32>
    %cst_12 = arith.constant 5.000000e-01 : f32
    %19 = vector.broadcast %cst_12 : f32 to vector<1x128xf32>
    %20 = arith.mulf %19, %18 : vector<1x128xf32>
    %21 = vector.extract_strided_slice %12 {offsets = [0, 128], sizes = [1, 128], strides = [1, 1]} : vector<1x512xf32> to vector<1x128xf32>
    %cst_13 = arith.constant 5.000000e-01 : f32
    %22 = vector.broadcast %cst_13 : f32 to vector<1x128xf32>
    %23 = arith.mulf %22, %21 : vector<1x128xf32>
    %24 = math.tanh %23 : vector<1x128xf32>
    %cst_14 = arith.constant 1.000000e+00 : f32
    %25 = vector.broadcast %cst_14 : f32 to vector<1x128xf32>
    %26 = arith.addf %24, %25 : vector<1x128xf32>
    %cst_15 = arith.constant 5.000000e-01 : f32
    %27 = vector.broadcast %cst_15 : f32 to vector<1x128xf32>
    %28 = arith.mulf %27, %26 : vector<1x128xf32>
    %29 = vector.extract_strided_slice %12 {offsets = [0, 256], sizes = [1, 128], strides = [1, 1]} : vector<1x512xf32> to vector<1x128xf32>
    %30 = math.tanh %29 : vector<1x128xf32>
    %31 = vector.extract_strided_slice %12 {offsets = [0, 384], sizes = [1, 128], strides = [1, 1]} : vector<1x512xf32> to vector<1x128xf32>
    %cst_16 = arith.constant 5.000000e-01 : f32
    %32 = vector.broadcast %cst_16 : f32 to vector<1x128xf32>
    %33 = arith.mulf %32, %31 : vector<1x128xf32>
    %34 = math.tanh %33 : vector<1x128xf32>
    %cst_17 = arith.constant 1.000000e+00 : f32
    %35 = vector.broadcast %cst_17 : f32 to vector<1x128xf32>
    %36 = arith.addf %34, %35 : vector<1x128xf32>
    %cst_18 = arith.constant 5.000000e-01 : f32
    %37 = vector.broadcast %cst_18 : f32 to vector<1x128xf32>
    %38 = arith.mulf %37, %36 : vector<1x128xf32>
    %39 = arith.mulf %28, %7 : vector<1x128xf32>
    %40 = arith.mulf %20, %30 : vector<1x128xf32>
    %41 = arith.addf %39, %40 : vector<1x128xf32>
    %42 = math.tanh %41 : vector<1x128xf32>
    %43 = arith.mulf %38, %42 : vector<1x128xf32>
    %c0_19 = arith.constant 0 : index
    %c0_20 = arith.constant 0 : index
    %44 = vector.load %arg4[%c0_19, %c0_20] : memref<1x128xf32, #tpu.memory_space<vmem>>, vector<1x128xf32>
    %45 = arith.mulf %43, %44 : vector<1x128xf32>
    %cst_21 = arith.constant dense<0.000000e+00> : vector<1xf32>
    %46 = vector.multi_reduction <add>, %45, %cst_21 [1] : vector<1x128xf32> to vector<1xf32>
    %47 = vector.shape_cast %46 : vector<1xf32> to vector<1x1xf32>
    %c0_22 = arith.constant 0 : index
    %c0_23 = arith.constant 0 : index
    %48 = vector.load %arg5[%c0_22, %c0_23] : memref<1x1xf32, #tpu.memory_space<vmem>>, vector<1x1xf32>
    %49 = arith.addf %47, %48 : vector<1x1xf32>
    %c0_24 = arith.constant 0 : index
    %c0_25 = arith.constant 0 : index
    %50 = vector.load %arg6[%c0_24, %c0_25] : memref<8x1xf32, #tpu.memory_space<vmem>>, vector<1x1xf32>
    tpu.vector_store %arg6[%c0_24, %c0_25], %49 {strides = array<i32>} : memref<8x1xf32, #tpu.memory_space<vmem>>, vector<1x1xf32>,
    %51 = vector.extract_strided_slice %5 {offsets = [1, 0], sizes = [1, 512], strides = [1, 1]} : vector<8x512xf32> to vector<1x512xf32>
    %52 = arith.truncf %43 : vector<1x128xf32> to vector<1x128xbf16>
    %c0_26 = arith.constant 0 : index
    %c0_27 = arith.constant 0 : index
    %53 = vector.load %arg2[%c0_26, %c0_27] : memref<128x512xbf16, #tpu.memory_space<vmem>>, vector<128x512xbf16>
    %cst_28 = arith.constant dense<0.000000e+00> : vector<1x512xf32>
    %54 = tpu.matmul %52, %53, %cst_28 {dimension_numbers = #tpu.dot_dimension_numbers<[1], [0], [0], [1], [0, 0, 1, 1], [], []>} : vector<1x128xbf16>, vector<128x512xbf16>, vector<1x512xf32> -> vector<1x512xf32>
    %55 = arith.addf %51, %54 : vector<1x512xf32>
    %56 = vector.extract_strided_slice %55 {offsets = [0, 0], sizes = [1, 128], strides = [1, 1]} : vector<1x512xf32> to vector<1x128xf32>
    %cst_29 = arith.constant 5.000000e-01 : f32
    %57 = vector.broadcast %cst_29 : f32 to vector<1x128xf32>
    %58 = arith.mulf %57, %56 : vector<1x128xf32>
    %59 = math.tanh %58 : vector<1x128xf32>
    %cst_30 = arith.constant 1.000000e+00 : f32
    %60 = vector.broadcast %cst_30 : f32 to vector<1x128xf32>
    %61 = arith.addf %59, %60 : vector<1x128xf32>
    %cst_31 = arith.constant 5.000000e-01 : f32
    %62 = vector.broadcast %cst_31 : f32 to vector<1x128xf32>
    %63 = arith.mulf %62, %61 : vector<1x128xf32>
    %64 = vector.extract_strided_slice %55 {offsets = [0, 128], sizes = [1, 128], strides = [1, 1]} : vector<1x512xf32> to vector<1x128xf32>
    %cst_32 = arith.constant 5.000000e-01 : f32
    %65 = vector.broadcast %cst_32 : f32 to vector<1x128xf32>
    %66 = arith.mulf %65, %64 : vector<1x128xf32>
    %67 = math.tanh %66 : vector<1x128xf32>
    %cst_33 = arith.constant 1.000000e+00 : f32
    %68 = vector.broadcast %cst_33 : f32 to vector<1x128xf32>
    %69 = arith.addf %67, %68 : vector<1x128xf32>
    %cst_34 = arith.constant 5.000000e-01 : f32
    %70 = vector.broadcast %cst_34 : f32 to vector<1x128xf32>
    %71 = arith.mulf %70, %69 : vector<1x128xf32>
    %72 = vector.extract_strided_slice %55 {offsets = [0, 256], sizes = [1, 128], strides = [1, 1]} : vector<1x512xf32> to vector<1x128xf32>
    %73 = math.tanh %72 : vector<1x128xf32>
    %74 = vector.extract_strided_slice %55 {offsets = [0, 384], sizes = [1, 128], strides = [1, 1]} : vector<1x512xf32> to vector<1x128xf32>
    %cst_35 = arith.constant 5.000000e-01 : f32
    %75 = vector.broadcast %cst_35 : f32 to vector<1x128xf32>
    %76 = arith.mulf %75, %74 : vector<1x128xf32>
    %77 = math.tanh %76 : vector<1x128xf32>
    %cst_36 = arith.constant 1.000000e+00 : f32
    %78 = vector.broadcast %cst_36 : f32 to vector<1x128xf32>
    %79 = arith.addf %77, %78 : vector<1x128xf32>
    %cst_37 = arith.constant 5.000000e-01 : f32
    %80 = vector.broadcast %cst_37 : f32 to vector<1x128xf32>
    %81 = arith.mulf %80, %79 : vector<1x128xf32>
    %82 = arith.mulf %71, %41 : vector<1x128xf32>
    %83 = arith.mulf %63, %73 : vector<1x128xf32>
    %84 = arith.addf %82, %83 : vector<1x128xf32>
    %85 = math.tanh %84 : vector<1x128xf32>
    %86 = arith.mulf %81, %85 : vector<1x128xf32>
    %c0_38 = arith.constant 0 : index
    %c0_39 = arith.constant 0 : index
    %87 = vector.load %arg4[%c0_38, %c0_39] : memref<1x128xf32, #tpu.memory_space<vmem>>, vector<1x128xf32>
    %88 = arith.mulf %86, %87 : vector<1x128xf32>
    %cst_40 = arith.constant dense<0.000000e+00> : vector<1xf32>
    %89 = vector.multi_reduction <add>, %88, %cst_40 [1] : vector<1x128xf32> to vector<1xf32>
    %90 = vector.shape_cast %89 : vector<1xf32> to vector<1x1xf32>
    %c0_41 = arith.constant 0 : index
    %c0_42 = arith.constant 0 : index
    %91 = vector.load %arg5[%c0_41, %c0_42] : memref<1x1xf32, #tpu.memory_space<vmem>>, vector<1x1xf32>
    %92 = arith.addf %90, %91 : vector<1x1xf32>
    %c1 = arith.constant 1 : index
    %c0_43 = arith.constant 0 : index
    %93 = vector.load %arg6[%c1, %c0_43] : memref<8x1xf32, #tpu.memory_space<vmem>>, vector<1x1xf32>
    tpu.vector_store %arg6[%c1, %c0_43], %92 {strides = array<i32>} : memref<8x1xf32, #tpu.memory_space<vmem>>, vector<1x1xf32>,
    %94 = vector.extract_strided_slice %5 {offsets = [2, 0], sizes = [1, 512], strides = [1, 1]} : vector<8x512xf32> to vector<1x512xf32>
    %95 = arith.truncf %86 : vector<1x128xf32> to vector<1x128xbf16>
    %c0_44 = arith.constant 0 : index
    %c0_45 = arith.constant 0 : index
    %96 = vector.load %arg2[%c0_44, %c0_45] : memref<128x512xbf16, #tpu.memory_space<vmem>>, vector<128x512xbf16>
    %cst_46 = arith.constant dense<0.000000e+00> : vector<1x512xf32>
    %97 = tpu.matmul %95, %96, %cst_46 {dimension_numbers = #tpu.dot_dimension_numbers<[1], [0], [0], [1], [0, 0, 1, 1], [], []>} : vector<1x128xbf16>, vector<128x512xbf16>, vector<1x512xf32> -> vector<1x512xf32>
    %98 = arith.addf %94, %97 : vector<1x512xf32>
    %99 = vector.extract_strided_slice %98 {offsets = [0, 0], sizes = [1, 128], strides = [1, 1]} : vector<1x512xf32> to vector<1x128xf32>
    %cst_47 = arith.constant 5.000000e-01 : f32
    %100 = vector.broadcast %cst_47 : f32 to vector<1x128xf32>
    %101 = arith.mulf %100, %99 : vector<1x128xf32>
    %102 = math.tanh %101 : vector<1x128xf32>
    %cst_48 = arith.constant 1.000000e+00 : f32
    %103 = vector.broadcast %cst_48 : f32 to vector<1x128xf32>
    %104 = arith.addf %102, %103 : vector<1x128xf32>
    %cst_49 = arith.constant 5.000000e-01 : f32
    %105 = vector.broadcast %cst_49 : f32 to vector<1x128xf32>
    %106 = arith.mulf %105, %104 : vector<1x128xf32>
    %107 = vector.extract_strided_slice %98 {offsets = [0, 128], sizes = [1, 128], strides = [1, 1]} : vector<1x512xf32> to vector<1x128xf32>
    %cst_50 = arith.constant 5.000000e-01 : f32
    %108 = vector.broadcast %cst_50 : f32 to vector<1x128xf32>
    %109 = arith.mulf %108, %107 : vector<1x128xf32>
    %110 = math.tanh %109 : vector<1x128xf32>
    %cst_51 = arith.constant 1.000000e+00 : f32
    %111 = vector.broadcast %cst_51 : f32 to vector<1x128xf32>
    %112 = arith.addf %110, %111 : vector<1x128xf32>
    %cst_52 = arith.constant 5.000000e-01 : f32
    %113 = vector.broadcast %cst_52 : f32 to vector<1x128xf32>
    %114 = arith.mulf %113, %112 : vector<1x128xf32>
    %115 = vector.extract_strided_slice %98 {offsets = [0, 256], sizes = [1, 128], strides = [1, 1]} : vector<1x512xf32> to vector<1x128xf32>
    %116 = math.tanh %115 : vector<1x128xf32>
    %117 = vector.extract_strided_slice %98 {offsets = [0, 384], sizes = [1, 128], strides = [1, 1]} : vector<1x512xf32> to vector<1x128xf32>
    %cst_53 = arith.constant 5.000000e-01 : f32
    %118 = vector.broadcast %cst_53 : f32 to vector<1x128xf32>
    %119 = arith.mulf %118, %117 : vector<1x128xf32>
    %120 = math.tanh %119 : vector<1x128xf32>
    %cst_54 = arith.constant 1.000000e+00 : f32
    %121 = vector.broadcast %cst_54 : f32 to vector<1x128xf32>
    %122 = arith.addf %120, %121 : vector<1x128xf32>
    %cst_55 = arith.constant 5.000000e-01 : f32
    %123 = vector.broadcast %cst_55 : f32 to vector<1x128xf32>
    %124 = arith.mulf %123, %122 : vector<1x128xf32>
    %125 = arith.mulf %114, %84 : vector<1x128xf32>
    %126 = arith.mulf %106, %116 : vector<1x128xf32>
    %127 = arith.addf %125, %126 : vector<1x128xf32>
    %128 = math.tanh %127 : vector<1x128xf32>
    %129 = arith.mulf %124, %128 : vector<1x128xf32>
    %c0_56 = arith.constant 0 : index
    %c0_57 = arith.constant 0 : index
    %130 = vector.load %arg4[%c0_56, %c0_57] : memref<1x128xf32, #tpu.memory_space<vmem>>, vector<1x128xf32>
    %131 = arith.mulf %129, %130 : vector<1x128xf32>
    %cst_58 = arith.constant dense<0.000000e+00> : vector<1xf32>
    %132 = vector.multi_reduction <add>, %131, %cst_58 [1] : vector<1x128xf32> to vector<1xf32>
    %133 = vector.shape_cast %132 : vector<1xf32> to vector<1x1xf32>
    %c0_59 = arith.constant 0 : index
    %c0_60 = arith.constant 0 : index
    %134 = vector.load %arg5[%c0_59, %c0_60] : memref<1x1xf32, #tpu.memory_space<vmem>>, vector<1x1xf32>
    %135 = arith.addf %133, %134 : vector<1x1xf32>
    %c2 = arith.constant 2 : index
    %c0_61 = arith.constant 0 : index
    %136 = vector.load %arg6[%c2, %c0_61] : memref<8x1xf32, #tpu.memory_space<vmem>>, vector<1x1xf32>
    tpu.vector_store %arg6[%c2, %c0_61], %135 {strides = array<i32>} : memref<8x1xf32, #tpu.memory_space<vmem>>, vector<1x1xf32>,
    %137 = vector.extract_strided_slice %5 {offsets = [3, 0], sizes = [1, 512], strides = [1, 1]} : vector<8x512xf32> to vector<1x512xf32>
    %138 = arith.truncf %129 : vector<1x128xf32> to vector<1x128xbf16>
    %c0_62 = arith.constant 0 : index
    %c0_63 = arith.constant 0 : index
    %139 = vector.load %arg2[%c0_62, %c0_63] : memref<128x512xbf16, #tpu.memory_space<vmem>>, vector<128x512xbf16>
    %cst_64 = arith.constant dense<0.000000e+00> : vector<1x512xf32>
    %140 = tpu.matmul %138, %139, %cst_64 {dimension_numbers = #tpu.dot_dimension_numbers<[1], [0], [0], [1], [0, 0, 1, 1], [], []>} : vector<1x128xbf16>, vector<128x512xbf16>, vector<1x512xf32> -> vector<1x512xf32>
    %141 = arith.addf %137, %140 : vector<1x512xf32>
    %142 = vector.extract_strided_slice %141 {offsets = [0, 0], sizes = [1, 128], strides = [1, 1]} : vector<1x512xf32> to vector<1x128xf32>
    %cst_65 = arith.constant 5.000000e-01 : f32
    %143 = vector.broadcast %cst_65 : f32 to vector<1x128xf32>
    %144 = arith.mulf %143, %142 : vector<1x128xf32>
    %145 = math.tanh %144 : vector<1x128xf32>
    %cst_66 = arith.constant 1.000000e+00 : f32
    %146 = vector.broadcast %cst_66 : f32 to vector<1x128xf32>
    %147 = arith.addf %145, %146 : vector<1x128xf32>
    %cst_67 = arith.constant 5.000000e-01 : f32
    %148 = vector.broadcast %cst_67 : f32 to vector<1x128xf32>
    %149 = arith.mulf %148, %147 : vector<1x128xf32>
    %150 = vector.extract_strided_slice %141 {offsets = [0, 128], sizes = [1, 128], strides = [1, 1]} : vector<1x512xf32> to vector<1x128xf32>
    %cst_68 = arith.constant 5.000000e-01 : f32
    %151 = vector.broadcast %cst_68 : f32 to vector<1x128xf32>
    %152 = arith.mulf %151, %150 : vector<1x128xf32>
    %153 = math.tanh %152 : vector<1x128xf32>
    %cst_69 = arith.constant 1.000000e+00 : f32
    %154 = vector.broadcast %cst_69 : f32 to vector<1x128xf32>
    %155 = arith.addf %153, %154 : vector<1x128xf32>
    %cst_70 = arith.constant 5.000000e-01 : f32
    %156 = vector.broadcast %cst_70 : f32 to vector<1x128xf32>
    %157 = arith.mulf %156, %155 : vector<1x128xf32>
    %158 = vector.extract_strided_slice %141 {offsets = [0, 256], sizes = [1, 128], strides = [1, 1]} : vector<1x512xf32> to vector<1x128xf32>
    %159 = math.tanh %158 : vector<1x128xf32>
    %160 = vector.extract_strided_slice %141 {offsets = [0, 384], sizes = [1, 128], strides = [1, 1]} : vector<1x512xf32> to vector<1x128xf32>
    %cst_71 = arith.constant 5.000000e-01 : f32
    %161 = vector.broadcast %cst_71 : f32 to vector<1x128xf32>
    %162 = arith.mulf %161, %160 : vector<1x128xf32>
    %163 = math.tanh %162 : vector<1x128xf32>
    %cst_72 = arith.constant 1.000000e+00 : f32
    %164 = vector.broadcast %cst_72 : f32 to vector<1x128xf32>
    %165 = arith.addf %163, %164 : vector<1x128xf32>
    %cst_73 = arith.constant 5.000000e-01 : f32
    %166 = vector.broadcast %cst_73 : f32 to vector<1x128xf32>
    %167 = arith.mulf %166, %165 : vector<1x128xf32>
    %168 = arith.mulf %157, %127 : vector<1x128xf32>
    %169 = arith.mulf %149, %159 : vector<1x128xf32>
    %170 = arith.addf %168, %169 : vector<1x128xf32>
    %171 = math.tanh %170 : vector<1x128xf32>
    %172 = arith.mulf %167, %171 : vector<1x128xf32>
    %c0_74 = arith.constant 0 : index
    %c0_75 = arith.constant 0 : index
    %173 = vector.load %arg4[%c0_74, %c0_75] : memref<1x128xf32, #tpu.memory_space<vmem>>, vector<1x128xf32>
    %174 = arith.mulf %172, %173 : vector<1x128xf32>
    %cst_76 = arith.constant dense<0.000000e+00> : vector<1xf32>
    %175 = vector.multi_reduction <add>, %174, %cst_76 [1] : vector<1x128xf32> to vector<1xf32>
    %176 = vector.shape_cast %175 : vector<1xf32> to vector<1x1xf32>
    %c0_77 = arith.constant 0 : index
    %c0_78 = arith.constant 0 : index
    %177 = vector.load %arg5[%c0_77, %c0_78] : memref<1x1xf32, #tpu.memory_space<vmem>>, vector<1x1xf32>
    %178 = arith.addf %176, %177 : vector<1x1xf32>
    %c3 = arith.constant 3 : index
    %c0_79 = arith.constant 0 : index
    %179 = vector.load %arg6[%c3, %c0_79] : memref<8x1xf32, #tpu.memory_space<vmem>>, vector<1x1xf32>
    tpu.vector_store %arg6[%c3, %c0_79], %178 {strides = array<i32>} : memref<8x1xf32, #tpu.memory_space<vmem>>, vector<1x1xf32>,
    %180 = vector.extract_strided_slice %5 {offsets = [4, 0], sizes = [1, 512], strides = [1, 1]} : vector<8x512xf32> to vector<1x512xf32>
    %181 = arith.truncf %172 : vector<1x128xf32> to vector<1x128xbf16>
    %c0_80 = arith.constant 0 : index
    %c0_81 = arith.constant 0 : index
    %182 = vector.load %arg2[%c0_80, %c0_81] : memref<128x512xbf16, #tpu.memory_space<vmem>>, vector<128x512xbf16>
    %cst_82 = arith.constant dense<0.000000e+00> : vector<1x512xf32>
    %183 = tpu.matmul %181, %182, %cst_82 {dimension_numbers = #tpu.dot_dimension_numbers<[1], [0], [0], [1], [0, 0, 1, 1], [], []>} : vector<1x128xbf16>, vector<128x512xbf16>, vector<1x512xf32> -> vector<1x512xf32>
    %184 = arith.addf %180, %183 : vector<1x512xf32>
    %185 = vector.extract_strided_slice %184 {offsets = [0, 0], sizes = [1, 128], strides = [1, 1]} : vector<1x512xf32> to vector<1x128xf32>
    %cst_83 = arith.constant 5.000000e-01 : f32
    %186 = vector.broadcast %cst_83 : f32 to vector<1x128xf32>
    %187 = arith.mulf %186, %185 : vector<1x128xf32>
    %188 = math.tanh %187 : vector<1x128xf32>
    %cst_84 = arith.constant 1.000000e+00 : f32
    %189 = vector.broadcast %cst_84 : f32 to vector<1x128xf32>
    %190 = arith.addf %188, %189 : vector<1x128xf32>
    %cst_85 = arith.constant 5.000000e-01 : f32
    %191 = vector.broadcast %cst_85 : f32 to vector<1x128xf32>
    %192 = arith.mulf %191, %190 : vector<1x128xf32>
    %193 = vector.extract_strided_slice %184 {offsets = [0, 128], sizes = [1, 128], strides = [1, 1]} : vector<1x512xf32> to vector<1x128xf32>
    %cst_86 = arith.constant 5.000000e-01 : f32
    %194 = vector.broadcast %cst_86 : f32 to vector<1x128xf32>
    %195 = arith.mulf %194, %193 : vector<1x128xf32>
    %196 = math.tanh %195 : vector<1x128xf32>
    %cst_87 = arith.constant 1.000000e+00 : f32
    %197 = vector.broadcast %cst_87 : f32 to vector<1x128xf32>
    %198 = arith.addf %196, %197 : vector<1x128xf32>
    %cst_88 = arith.constant 5.000000e-01 : f32
    %199 = vector.broadcast %cst_88 : f32 to vector<1x128xf32>
    %200 = arith.mulf %199, %198 : vector<1x128xf32>
    %201 = vector.extract_strided_slice %184 {offsets = [0, 256], sizes = [1, 128], strides = [1, 1]} : vector<1x512xf32> to vector<1x128xf32>
    %202 = math.tanh %201 : vector<1x128xf32>
    %203 = vector.extract_strided_slice %184 {offsets = [0, 384], sizes = [1, 128], strides = [1, 1]} : vector<1x512xf32> to vector<1x128xf32>
    %cst_89 = arith.constant 5.000000e-01 : f32
    %204 = vector.broadcast %cst_89 : f32 to vector<1x128xf32>
    %205 = arith.mulf %204, %203 : vector<1x128xf32>
    %206 = math.tanh %205 : vector<1x128xf32>
    %cst_90 = arith.constant 1.000000e+00 : f32
    %207 = vector.broadcast %cst_90 : f32 to vector<1x128xf32>
    %208 = arith.addf %206, %207 : vector<1x128xf32>
    %cst_91 = arith.constant 5.000000e-01 : f32
    %209 = vector.broadcast %cst_91 : f32 to vector<1x128xf32>
    %210 = arith.mulf %209, %208 : vector<1x128xf32>
    %211 = arith.mulf %200, %170 : vector<1x128xf32>
    %212 = arith.mulf %192, %202 : vector<1x128xf32>
    %213 = arith.addf %211, %212 : vector<1x128xf32>
    %214 = math.tanh %213 : vector<1x128xf32>
    %215 = arith.mulf %210, %214 : vector<1x128xf32>
    %c0_92 = arith.constant 0 : index
    %c0_93 = arith.constant 0 : index
    %216 = vector.load %arg4[%c0_92, %c0_93] : memref<1x128xf32, #tpu.memory_space<vmem>>, vector<1x128xf32>
    %217 = arith.mulf %215, %216 : vector<1x128xf32>
    %cst_94 = arith.constant dense<0.000000e+00> : vector<1xf32>
    %218 = vector.multi_reduction <add>, %217, %cst_94 [1] : vector<1x128xf32> to vector<1xf32>
    %219 = vector.shape_cast %218 : vector<1xf32> to vector<1x1xf32>
    %c0_95 = arith.constant 0 : index
    %c0_96 = arith.constant 0 : index
    %220 = vector.load %arg5[%c0_95, %c0_96] : memref<1x1xf32, #tpu.memory_space<vmem>>, vector<1x1xf32>
    %221 = arith.addf %219, %220 : vector<1x1xf32>
    %c4 = arith.constant 4 : index
    %c0_97 = arith.constant 0 : index
    %222 = vector.load %arg6[%c4, %c0_97] : memref<8x1xf32, #tpu.memory_space<vmem>>, vector<1x1xf32>
    tpu.vector_store %arg6[%c4, %c0_97], %221 {strides = array<i32>} : memref<8x1xf32, #tpu.memory_space<vmem>>, vector<1x1xf32>,
    %223 = vector.extract_strided_slice %5 {offsets = [5, 0], sizes = [1, 512], strides = [1, 1]} : vector<8x512xf32> to vector<1x512xf32>
    %224 = arith.truncf %215 : vector<1x128xf32> to vector<1x128xbf16>
    %c0_98 = arith.constant 0 : index
    %c0_99 = arith.constant 0 : index
    %225 = vector.load %arg2[%c0_98, %c0_99] : memref<128x512xbf16, #tpu.memory_space<vmem>>, vector<128x512xbf16>
    %cst_100 = arith.constant dense<0.000000e+00> : vector<1x512xf32>
    %226 = tpu.matmul %224, %225, %cst_100 {dimension_numbers = #tpu.dot_dimension_numbers<[1], [0], [0], [1], [0, 0, 1, 1], [], []>} : vector<1x128xbf16>, vector<128x512xbf16>, vector<1x512xf32> -> vector<1x512xf32>
    %227 = arith.addf %223, %226 : vector<1x512xf32>
    %228 = vector.extract_strided_slice %227 {offsets = [0, 0], sizes = [1, 128], strides = [1, 1]} : vector<1x512xf32> to vector<1x128xf32>
    %cst_101 = arith.constant 5.000000e-01 : f32
    %229 = vector.broadcast %cst_101 : f32 to vector<1x128xf32>
    %230 = arith.mulf %229, %228 : vector<1x128xf32>
    %231 = math.tanh %230 : vector<1x128xf32>
    %cst_102 = arith.constant 1.000000e+00 : f32
    %232 = vector.broadcast %cst_102 : f32 to vector<1x128xf32>
    %233 = arith.addf %231, %232 : vector<1x128xf32>
    %cst_103 = arith.constant 5.000000e-01 : f32
    %234 = vector.broadcast %cst_103 : f32 to vector<1x128xf32>
    %235 = arith.mulf %234, %233 : vector<1x128xf32>
    %236 = vector.extract_strided_slice %227 {offsets = [0, 128], sizes = [1, 128], strides = [1, 1]} : vector<1x512xf32> to vector<1x128xf32>
    %cst_104 = arith.constant 5.000000e-01 : f32
    %237 = vector.broadcast %cst_104 : f32 to vector<1x128xf32>
    %238 = arith.mulf %237, %236 : vector<1x128xf32>
    %239 = math.tanh %238 : vector<1x128xf32>
    %cst_105 = arith.constant 1.000000e+00 : f32
    %240 = vector.broadcast %cst_105 : f32 to vector<1x128xf32>
    %241 = arith.addf %239, %240 : vector<1x128xf32>
    %cst_106 = arith.constant 5.000000e-01 : f32
    %242 = vector.broadcast %cst_106 : f32 to vector<1x128xf32>
    %243 = arith.mulf %242, %241 : vector<1x128xf32>
    %244 = vector.extract_strided_slice %227 {offsets = [0, 256], sizes = [1, 128], strides = [1, 1]} : vector<1x512xf32> to vector<1x128xf32>
    %245 = math.tanh %244 : vector<1x128xf32>
    %246 = vector.extract_strided_slice %227 {offsets = [0, 384], sizes = [1, 128], strides = [1, 1]} : vector<1x512xf32> to vector<1x128xf32>
    %cst_107 = arith.constant 5.000000e-01 : f32
    %247 = vector.broadcast %cst_107 : f32 to vector<1x128xf32>
    %248 = arith.mulf %247, %246 : vector<1x128xf32>
    %249 = math.tanh %248 : vector<1x128xf32>
    %cst_108 = arith.constant 1.000000e+00 : f32
    %250 = vector.broadcast %cst_108 : f32 to vector<1x128xf32>
    %251 = arith.addf %249, %250 : vector<1x128xf32>
    %cst_109 = arith.constant 5.000000e-01 : f32
    %252 = vector.broadcast %cst_109 : f32 to vector<1x128xf32>
    %253 = arith.mulf %252, %251 : vector<1x128xf32>
    %254 = arith.mulf %243, %213 : vector<1x128xf32>
    %255 = arith.mulf %235, %245 : vector<1x128xf32>
    %256 = arith.addf %254, %255 : vector<1x128xf32>
    %257 = math.tanh %256 : vector<1x128xf32>
    %258 = arith.mulf %253, %257 : vector<1x128xf32>
    %c0_110 = arith.constant 0 : index
    %c0_111 = arith.constant 0 : index
    %259 = vector.load %arg4[%c0_110, %c0_111] : memref<1x128xf32, #tpu.memory_space<vmem>>, vector<1x128xf32>
    %260 = arith.mulf %258, %259 : vector<1x128xf32>
    %cst_112 = arith.constant dense<0.000000e+00> : vector<1xf32>
    %261 = vector.multi_reduction <add>, %260, %cst_112 [1] : vector<1x128xf32> to vector<1xf32>
    %262 = vector.shape_cast %261 : vector<1xf32> to vector<1x1xf32>
    %c0_113 = arith.constant 0 : index
    %c0_114 = arith.constant 0 : index
    %263 = vector.load %arg5[%c0_113, %c0_114] : memref<1x1xf32, #tpu.memory_space<vmem>>, vector<1x1xf32>
    %264 = arith.addf %262, %263 : vector<1x1xf32>
    %c5 = arith.constant 5 : index
    %c0_115 = arith.constant 0 : index
    %265 = vector.load %arg6[%c5, %c0_115] : memref<8x1xf32, #tpu.memory_space<vmem>>, vector<1x1xf32>
    tpu.vector_store %arg6[%c5, %c0_115], %264 {strides = array<i32>} : memref<8x1xf32, #tpu.memory_space<vmem>>, vector<1x1xf32>,
    %266 = vector.extract_strided_slice %5 {offsets = [6, 0], sizes = [1, 512], strides = [1, 1]} : vector<8x512xf32> to vector<1x512xf32>
    %267 = arith.truncf %258 : vector<1x128xf32> to vector<1x128xbf16>
    %c0_116 = arith.constant 0 : index
    %c0_117 = arith.constant 0 : index
    %268 = vector.load %arg2[%c0_116, %c0_117] : memref<128x512xbf16, #tpu.memory_space<vmem>>, vector<128x512xbf16>
    %cst_118 = arith.constant dense<0.000000e+00> : vector<1x512xf32>
    %269 = tpu.matmul %267, %268, %cst_118 {dimension_numbers = #tpu.dot_dimension_numbers<[1], [0], [0], [1], [0, 0, 1, 1], [], []>} : vector<1x128xbf16>, vector<128x512xbf16>, vector<1x512xf32> -> vector<1x512xf32>
    %270 = arith.addf %266, %269 : vector<1x512xf32>
    %271 = vector.extract_strided_slice %270 {offsets = [0, 0], sizes = [1, 128], strides = [1, 1]} : vector<1x512xf32> to vector<1x128xf32>
    %cst_119 = arith.constant 5.000000e-01 : f32
    %272 = vector.broadcast %cst_119 : f32 to vector<1x128xf32>
    %273 = arith.mulf %272, %271 : vector<1x128xf32>
    %274 = math.tanh %273 : vector<1x128xf32>
    %cst_120 = arith.constant 1.000000e+00 : f32
    %275 = vector.broadcast %cst_120 : f32 to vector<1x128xf32>
    %276 = arith.addf %274, %275 : vector<1x128xf32>
    %cst_121 = arith.constant 5.000000e-01 : f32
    %277 = vector.broadcast %cst_121 : f32 to vector<1x128xf32>
    %278 = arith.mulf %277, %276 : vector<1x128xf32>
    %279 = vector.extract_strided_slice %270 {offsets = [0, 128], sizes = [1, 128], strides = [1, 1]} : vector<1x512xf32> to vector<1x128xf32>
    %cst_122 = arith.constant 5.000000e-01 : f32
    %280 = vector.broadcast %cst_122 : f32 to vector<1x128xf32>
    %281 = arith.mulf %280, %279 : vector<1x128xf32>
    %282 = math.tanh %281 : vector<1x128xf32>
    %cst_123 = arith.constant 1.000000e+00 : f32
    %283 = vector.broadcast %cst_123 : f32 to vector<1x128xf32>
    %284 = arith.addf %282, %283 : vector<1x128xf32>
    %cst_124 = arith.constant 5.000000e-01 : f32
    %285 = vector.broadcast %cst_124 : f32 to vector<1x128xf32>
    %286 = arith.mulf %285, %284 : vector<1x128xf32>
    %287 = vector.extract_strided_slice %270 {offsets = [0, 256], sizes = [1, 128], strides = [1, 1]} : vector<1x512xf32> to vector<1x128xf32>
    %288 = math.tanh %287 : vector<1x128xf32>
    %289 = vector.extract_strided_slice %270 {offsets = [0, 384], sizes = [1, 128], strides = [1, 1]} : vector<1x512xf32> to vector<1x128xf32>
    %cst_125 = arith.constant 5.000000e-01 : f32
    %290 = vector.broadcast %cst_125 : f32 to vector<1x128xf32>
    %291 = arith.mulf %290, %289 : vector<1x128xf32>
    %292 = math.tanh %291 : vector<1x128xf32>
    %cst_126 = arith.constant 1.000000e+00 : f32
    %293 = vector.broadcast %cst_126 : f32 to vector<1x128xf32>
    %294 = arith.addf %292, %293 : vector<1x128xf32>
    %cst_127 = arith.constant 5.000000e-01 : f32
    %295 = vector.broadcast %cst_127 : f32 to vector<1x128xf32>
    %296 = arith.mulf %295, %294 : vector<1x128xf32>
    %297 = arith.mulf %286, %256 : vector<1x128xf32>
    %298 = arith.mulf %278, %288 : vector<1x128xf32>
    %299 = arith.addf %297, %298 : vector<1x128xf32>
    %300 = math.tanh %299 : vector<1x128xf32>
    %301 = arith.mulf %296, %300 : vector<1x128xf32>
    %c0_128 = arith.constant 0 : index
    %c0_129 = arith.constant 0 : index
    %302 = vector.load %arg4[%c0_128, %c0_129] : memref<1x128xf32, #tpu.memory_space<vmem>>, vector<1x128xf32>
    %303 = arith.mulf %301, %302 : vector<1x128xf32>
    %cst_130 = arith.constant dense<0.000000e+00> : vector<1xf32>
    %304 = vector.multi_reduction <add>, %303, %cst_130 [1] : vector<1x128xf32> to vector<1xf32>
    %305 = vector.shape_cast %304 : vector<1xf32> to vector<1x1xf32>
    %c0_131 = arith.constant 0 : index
    %c0_132 = arith.constant 0 : index
    %306 = vector.load %arg5[%c0_131, %c0_132] : memref<1x1xf32, #tpu.memory_space<vmem>>, vector<1x1xf32>
    %307 = arith.addf %305, %306 : vector<1x1xf32>
    %c6 = arith.constant 6 : index
    %c0_133 = arith.constant 0 : index
    %308 = vector.load %arg6[%c6, %c0_133] : memref<8x1xf32, #tpu.memory_space<vmem>>, vector<1x1xf32>
    tpu.vector_store %arg6[%c6, %c0_133], %307 {strides = array<i32>} : memref<8x1xf32, #tpu.memory_space<vmem>>, vector<1x1xf32>,
    %309 = vector.extract_strided_slice %5 {offsets = [7, 0], sizes = [1, 512], strides = [1, 1]} : vector<8x512xf32> to vector<1x512xf32>
    %310 = arith.truncf %301 : vector<1x128xf32> to vector<1x128xbf16>
    %c0_134 = arith.constant 0 : index
    %c0_135 = arith.constant 0 : index
    %311 = vector.load %arg2[%c0_134, %c0_135] : memref<128x512xbf16, #tpu.memory_space<vmem>>, vector<128x512xbf16>
    %cst_136 = arith.constant dense<0.000000e+00> : vector<1x512xf32>
    %312 = tpu.matmul %310, %311, %cst_136 {dimension_numbers = #tpu.dot_dimension_numbers<[1], [0], [0], [1], [0, 0, 1, 1], [], []>} : vector<1x128xbf16>, vector<128x512xbf16>, vector<1x512xf32> -> vector<1x512xf32>
    %313 = arith.addf %309, %312 : vector<1x512xf32>
    %314 = vector.extract_strided_slice %313 {offsets = [0, 0], sizes = [1, 128], strides = [1, 1]} : vector<1x512xf32> to vector<1x128xf32>
    %cst_137 = arith.constant 5.000000e-01 : f32
    %315 = vector.broadcast %cst_137 : f32 to vector<1x128xf32>
    %316 = arith.mulf %315, %314 : vector<1x128xf32>
    %317 = math.tanh %316 : vector<1x128xf32>
    %cst_138 = arith.constant 1.000000e+00 : f32
    %318 = vector.broadcast %cst_138 : f32 to vector<1x128xf32>
    %319 = arith.addf %317, %318 : vector<1x128xf32>
    %cst_139 = arith.constant 5.000000e-01 : f32
    %320 = vector.broadcast %cst_139 : f32 to vector<1x128xf32>
    %321 = arith.mulf %320, %319 : vector<1x128xf32>
    %322 = vector.extract_strided_slice %313 {offsets = [0, 128], sizes = [1, 128], strides = [1, 1]} : vector<1x512xf32> to vector<1x128xf32>
    %cst_140 = arith.constant 5.000000e-01 : f32
    %323 = vector.broadcast %cst_140 : f32 to vector<1x128xf32>
    %324 = arith.mulf %323, %322 : vector<1x128xf32>
    %325 = math.tanh %324 : vector<1x128xf32>
    %cst_141 = arith.constant 1.000000e+00 : f32
    %326 = vector.broadcast %cst_141 : f32 to vector<1x128xf32>
    %327 = arith.addf %325, %326 : vector<1x128xf32>
    %cst_142 = arith.constant 5.000000e-01 : f32
    %328 = vector.broadcast %cst_142 : f32 to vector<1x128xf32>
    %329 = arith.mulf %328, %327 : vector<1x128xf32>
    %330 = vector.extract_strided_slice %313 {offsets = [0, 256], sizes = [1, 128], strides = [1, 1]} : vector<1x512xf32> to vector<1x128xf32>
    %331 = math.tanh %330 : vector<1x128xf32>
    %332 = vector.extract_strided_slice %313 {offsets = [0, 384], sizes = [1, 128], strides = [1, 1]} : vector<1x512xf32> to vector<1x128xf32>
    %cst_143 = arith.constant 5.000000e-01 : f32
    %333 = vector.broadcast %cst_143 : f32 to vector<1x128xf32>
    %334 = arith.mulf %333, %332 : vector<1x128xf32>
    %335 = math.tanh %334 : vector<1x128xf32>
    %cst_144 = arith.constant 1.000000e+00 : f32
    %336 = vector.broadcast %cst_144 : f32 to vector<1x128xf32>
    %337 = arith.addf %335, %336 : vector<1x128xf32>
    %cst_145 = arith.constant 5.000000e-01 : f32
    %338 = vector.broadcast %cst_145 : f32 to vector<1x128xf32>
    %339 = arith.mulf %338, %337 : vector<1x128xf32>
    %340 = arith.mulf %329, %299 : vector<1x128xf32>
    %341 = arith.mulf %321, %331 : vector<1x128xf32>
    %342 = arith.addf %340, %341 : vector<1x128xf32>
    %343 = math.tanh %342 : vector<1x128xf32>
    %344 = arith.mulf %339, %343 : vector<1x128xf32>
    %c0_146 = arith.constant 0 : index
    %c0_147 = arith.constant 0 : index
    %345 = vector.load %arg4[%c0_146, %c0_147] : memref<1x128xf32, #tpu.memory_space<vmem>>, vector<1x128xf32>
    %346 = arith.mulf %344, %345 : vector<1x128xf32>
    %cst_148 = arith.constant dense<0.000000e+00> : vector<1xf32>
    %347 = vector.multi_reduction <add>, %346, %cst_148 [1] : vector<1x128xf32> to vector<1xf32>
    %348 = vector.shape_cast %347 : vector<1xf32> to vector<1x1xf32>
    %c0_149 = arith.constant 0 : index
    %c0_150 = arith.constant 0 : index
    %349 = vector.load %arg5[%c0_149, %c0_150] : memref<1x1xf32, #tpu.memory_space<vmem>>, vector<1x1xf32>
    %350 = arith.addf %348, %349 : vector<1x1xf32>
    %c7 = arith.constant 7 : index
    %c0_151 = arith.constant 0 : index
    %351 = vector.load %arg6[%c7, %c0_151] : memref<8x1xf32, #tpu.memory_space<vmem>>, vector<1x1xf32>
    tpu.vector_store %arg6[%c7, %c0_151], %350 {strides = array<i32>} : memref<8x1xf32, #tpu.memory_space<vmem>>, vector<1x1xf32>,
    return
  }
}

</mosaic_0001>

<llo_original>
// kernel: tpu_custom_call.1
$region0: #{tpu_custom_call.1}
  #allocation0 [shape = 'u32[]', space=smem, size = 0x4, offset = 0x4, fixed_abs, tag = 'smem constant byte address 0x4 - core index']
  #allocation1 [shape = 'u32[72,128]{1,0:T(1,128)}', space=vmem, size = 0x9000, scoped, tag = 'internal scratch']
  #allocation2 [shape = 'f32[1,1]{1,0:T(1,128)S(1)}', space=vmem, size = 0x200, scoped, tag = 'scoped memory for tpu_custom_call.1']
  %s0 = inlined_call_operand.hbm [shape: f32[8,16], index: 0, kind: input, shape index: {}]
  %s1 = inlined_call_operand.hbm [shape: f32[16,512], index: 1, kind: input, shape index: {}]
  %s2 = inlined_call_operand.hbm [shape: bf16[128,512], index: 2, kind: input, shape index: {}]
  %s3 = inlined_call_operand.vmem [shape: f32[1,512], index: 3, kind: input, shape index: {}]
  %s4 = inlined_call_operand.vmem [shape: f32[1,128], index: 4, kind: input, shape index: {}]
  %s5 = inlined_call_operand.<no memory space> [shape: f32[1,1], index: 5, kind: input, shape index: {}]
  %s6 = inlined_call_operand.vmem [shape: f32[8,1], index: 6, kind: output, shape index: {}]
  %s7 = sld [smem:[#allocation0]]
  $region46: #{tpu_custom_call.1} parent=0
    _
  %s9 = ssub.s32 1, %s7
  %s10 = scalar_select 0, %s9, %s7
  %v11 = vstv %s5
  %12 = vst [vmem:[#allocation2] sm:$0x1] %v11
  $region1: #{tpu_custom_call.1} parent=0
    #allocation3 [shape = 'u8[4096]{0}', space=vmem, size = 0x1000, scoped, tag = 'input window, operand 0, single buffered']
    #allocation4 [shape = 's32[1]{0}', space=sflag, size = 0x4, scoped, tag = 'scoped memory for tpu_custom_call.1']
    #allocation5 [shape = 'u8[32768]{0}', space=vmem, size = 0x8000, scoped, tag = 'input window, operand 1, single buffered']
    #allocation6 [shape = 's32[1]{0}', space=sflag, size = 0x4, scoped, tag = 'scoped memory for tpu_custom_call.1']
    #allocation7 [shape = 'u8[131072]{0}', space=vmem, size = 0x20000, scoped, tag = 'input window, operand 2, single buffered']
    %13 = vsyncpa [#allocation4], 0
    %14 = vsyncpa [#allocation6], 0
    // Predicated region
    $region2: #{tpu_custom_call.1} parent=1 // pred_check
      _
    $region3: #{tpu_custom_call.1} parent=1 // pred_check_branch
      %16 = sbr.rel (0) target = $region5
    $region4: #{tpu_custom_call.1} parent=1 // pred_region
      %18 = vsyncadd [#allocation4], 0
      %s20 = sshll.u32 %s0, 4
      %s21 = int_to_ptr.hbm [resolvable:$true] %s20
      %s22 = sshll.u32 [#allocation3], 4
      %s23 = int_to_ptr.vmem [resolvable:$true] %s22
      %25 = dma.hbm_to_vmem [thread:$0]  %s21, 128, %s23, [#allocation4]
    $region5: #{tpu_custom_call.1} parent=1 // pred_fallthru
      _
    // Predicated region
    $region6: #{tpu_custom_call.1} parent=1 // pred_check
      _
    $region7: #{tpu_custom_call.1} parent=1 // pred_check_branch
      %27 = sbr.rel (0) target = $region9
    $region8: #{tpu_custom_call.1} parent=1 // pred_region
      %29 = vsyncadd [#allocation6], 0
      %s30 = sshll.u32 %s1, 4
      %s31 = int_to_ptr.hbm [resolvable:$true] %s30
      %s32 = sshll.u32 [#allocation5], 4
      %s33 = int_to_ptr.vmem [resolvable:$true] %s32
      %38 = dma.hbm_to_vmem [thread:$0]  %s31, 1024, %s33, [#allocation6], 512, 512, 32
    $region9: #{tpu_custom_call.1} parent=1 // pred_fallthru
      _
    // Predicated region
    $region10: #{tpu_custom_call.1} parent=1 // pred_check
      _
    $region11: #{tpu_custom_call.1} parent=1 // pred_check_branch
      %40 = sbr.rel (0) target = $region13
    $region12: #{tpu_custom_call.1} parent=1 // pred_region
      %42 = vsyncadd [#allocation6], 0
      %s43 = sshll.u32 %s2, 4
      %s44 = int_to_ptr.hbm [resolvable:$true] %s43
      %s45 = sshll.u32 [#allocation7], 4
      %s46 = int_to_ptr.vmem [resolvable:$true] %s45
      %51 = dma.hbm_to_vmem [thread:$0]  %s44, 4096, %s46, [#allocation6], 256, 256, 16
    $region13: #{tpu_custom_call.1} parent=1 // pred_fallthru
      _
    // Predicated region
    $region14: #{tpu_custom_call.1} parent=1 // pred_check
      _
    $region15: #{tpu_custom_call.1} parent=1 // pred_check_branch
      %53 = sbr.rel (0) target = $region17
    $region16: #{tpu_custom_call.1} parent=1 // pred_region
      _
    $region17: #{tpu_custom_call.1} parent=1 // pred_fallthru
      _
    // Predicated region
    $region18: #{tpu_custom_call.1} parent=1 // pred_check
      _
    $region19: #{tpu_custom_call.1} parent=1 // pred_check_branch
      %55 = sbr.rel (0) target = $region21
    $region20: #{tpu_custom_call.1} parent=1 // pred_region
      _
    $region21: #{tpu_custom_call.1} parent=1 // pred_fallthru
      _
    // Predicated region
    $region22: #{tpu_custom_call.1} parent=1 // pred_check
      _
    $region23: #{tpu_custom_call.1} parent=1 // pred_check_branch
      %57 = sbr.rel (0) target = $region25
    $region24: #{tpu_custom_call.1} parent=1 // pred_region
      _
    $region25: #{tpu_custom_call.1} parent=1 // pred_fallthru
      _
    // Predicated region
    $region26: #{tpu_custom_call.1} parent=1 // pred_check
      _
    $region27: #{tpu_custom_call.1} parent=1 // pred_check_branch
      %59 = sbr.rel (0) target = $region29
    $region28: #{tpu_custom_call.1} parent=1 // pred_region
      %61 = dma.done [#allocation4], 128
    $region29: #{tpu_custom_call.1} parent=1 // pred_fallthru
      _
    // Predicated region
    $region30: #{tpu_custom_call.1} parent=1 // pred_check
      _
    $region31: #{tpu_custom_call.1} parent=1 // pred_check_branch
      %63 = sbr.rel (0) target = $region33
    $region32: #{tpu_custom_call.1} parent=1 // pred_region
      %65 = dma.done [#allocation6], 1024
    $region33: #{tpu_custom_call.1} parent=1 // pred_fallthru
      _
    // Predicated region
    $region34: #{tpu_custom_call.1} parent=1 // pred_check
      _
    $region35: #{tpu_custom_call.1} parent=1 // pred_check_branch
      %67 = sbr.rel (0) target = $region37
    $region36: #{tpu_custom_call.1} parent=1 // pred_region
      %69 = dma.done [#allocation6], 4096
    $region37: #{tpu_custom_call.1} parent=1 // pred_fallthru
      _
    %v71 = vld [vmem:[#allocation3] sm:$0xff]
    %v72 = vld [vmem:[#allocation5] sm:$0xff]
    %v73 = vld [vmem:[#allocation5 + $0x8] sm:$0xff]
    %v74 = vld [vmem:[#allocation5 + $0x10] sm:$0xff]
    %v75 = vld [vmem:[#allocation5 + $0x18] sm:$0xff]
    %v76 = vld [vmem:[#allocation5 + $0x20] sm:$0xff]
    %v77 = vld [vmem:[#allocation5 + $0x28] sm:$0xff]
    %v78 = vld [vmem:[#allocation5 + $0x30] sm:$0xff]
    %v79 = vld [vmem:[#allocation5 + $0x38] sm:$0xff]
    %v80 = vld [vmem:[%s3] sm:$0xf]
    %v82 = vperm.slane %v80, 0
    %v83 = vperm.slane %v80, 1
    %v84 = vperm.slane %v80, 2
    %v85 = vperm.slane %v80, 3
    %vm90 = vcmask 130048
    %v92 = vsel %vm90, %v71, 0
    %94 = vmatpush.msra.mxu0 0.0
    %95 = vmatpush.msra.mxu0 0.0
    %96 = vmatpush.msra.mxu0 0.0
    %97 = vmatpush.msra.mxu0 0.0
    %98 = vmatpush.msra.mxu0 0.0
    %99 = vmatpush.msra.mxu0 0.0
    %100 = vmatpush.msra.mxu0 0.0
    %101 = vmatpush.msra.mxu0 0.0
    %102 = vmatpush.msra.mxu0 0.0
    %103 = vmatpush.msra.mxu0 0.0
    %104 = vmatpush.msra.mxu0 0.0
    %105 = vmatpush.msra.mxu0 0.0
    %106 = vmatpush.msra.mxu0 0.0
    %107 = vmatpush.msra.mxu0 0.0
    %108 = vmatpush.msra.mxu0 %v76
    %109 = vmatpush.msra.mxu0 %v72
    %110 = vmatmul.f32.gmra.mxu0 %v92
    %v111 = vpop.f32.mrf.mxu0
    %v112 = vadd.f32 %v82, %v111
    %113 = vdwg.mxu0
    %114 = vmatpush.msra.mxu0 0.0
    %115 = vmatpush.msra.mxu0 0.0
    %116 = vmatpush.msra.mxu0 0.0
    %117 = vmatpush.msra.mxu0 0.0
    %118 = vmatpush.msra.mxu0 0.0
    %119 = vmatpush.msra.mxu0 0.0
    %120 = vmatpush.msra.mxu0 0.0
    %121 = vmatpush.msra.mxu0 0.0
    %122 = vmatpush.msra.mxu0 0.0
    %123 = vmatpush.msra.mxu0 0.0
    %124 = vmatpush.msra.mxu0 0.0
    %125 = vmatpush.msra.mxu0 0.0
    %126 = vmatpush.msra.mxu0 0.0
    %127 = vmatpush.msra.mxu0 0.0
    %128 = vmatpush.msra.mxu0 %v77
    %129 = vmatpush.msra.mxu0 %v73
    %130 = vmatmul.f32.gmra.mxu0 %v92
    %v131 = vpop.f32.mrf.mxu0
    %v132 = vadd.f32 %v83, %v131
    %133 = vdwg.mxu0
    %134 = vmatpush.msra.mxu0 0.0
    %135 = vmatpush.msra.mxu0 0.0
    %136 = vmatpush.msra.mxu0 0.0
    %137 = vmatpush.msra.mxu0 0.0
    %138 = vmatpush.msra.mxu0 0.0
    %139 = vmatpush.msra.mxu0 0.0
    %140 = vmatpush.msra.mxu0 0.0
    %141 = vmatpush.msra.mxu0 0.0
    %142 = vmatpush.msra.mxu0 0.0
    %143 = vmatpush.msra.mxu0 0.0
    %144 = vmatpush.msra.mxu0 0.0
    %145 = vmatpush.msra.mxu0 0.0
    %146 = vmatpush.msra.mxu0 0.0
    %147 = vmatpush.msra.mxu0 0.0
    %148 = vmatpush.msra.mxu0 %v78
    %149 = vmatpush.msra.mxu0 %v74
    %150 = vmatmul.f32.gmra.mxu0 %v92
    %v151 = vpop.f32.mrf.mxu0
    %v152 = vadd.f32 %v84, %v151
    %153 = vdwg.mxu0
    %154 = vmatpush.msra.mxu0 0.0
    %155 = vmatpush.msra.mxu0 0.0
    %156 = vmatpush.msra.mxu0 0.0
    %157 = vmatpush.msra.mxu0 0.0
    %158 = vmatpush.msra.mxu0 0.0
    %159 = vmatpush.msra.mxu0 0.0
    %160 = vmatpush.msra.mxu0 0.0
    %161 = vmatpush.msra.mxu0 0.0
    %162 = vmatpush.msra.mxu0 0.0
    %163 = vmatpush.msra.mxu0 0.0
    %164 = vmatpush.msra.mxu0 0.0
    %165 = vmatpush.msra.mxu0 0.0
    %166 = vmatpush.msra.mxu0 0.0
    %167 = vmatpush.msra.mxu0 0.0
    %168 = vmatpush.msra.mxu0 %v79
    %169 = vmatpush.msra.mxu0 %v75
    %170 = vmatmul.f32.gmra.mxu0 %v92
    %v171 = vpop.f32.mrf.mxu0
    %v172 = vadd.f32 %v85, %v171
    %173 = vdwg.mxu0
    %v174 = vld [vmem:[#allocation7] sm:$0xff]
    %v175 = vld [vmem:[#allocation7 + $0x8] sm:$0xff]
    %v176 = vld [vmem:[#allocation7 + $0x10] sm:$0xff]
    %v177 = vld [vmem:[#allocation7 + $0x18] sm:$0xff]
    %v178 = vld [vmem:[#allocation7 + $0x20] sm:$0xff]
    %v179 = vld [vmem:[#allocation7 + $0x28] sm:$0xff]
    %v180 = vld [vmem:[#allocation7 + $0x30] sm:$0xff]
    %v181 = vld [vmem:[#allocation7 + $0x38] sm:$0xff]
    %v182 = vld [vmem:[#allocation7 + $0x40] sm:$0xff]
    %v183 = vld [vmem:[#allocation7 + $0x48] sm:$0xff]
    %v184 = vld [vmem:[#allocation7 + $0x50] sm:$0xff]
    %v185 = vld [vmem:[#allocation7 + $0x58] sm:$0xff]
    %v186 = vld [vmem:[#allocation7 + $0x60] sm:$0xff]
    %v187 = vld [vmem:[#allocation7 + $0x68] sm:$0xff]
    %v188 = vld [vmem:[#allocation7 + $0x70] sm:$0xff]
    %v189 = vld [vmem:[#allocation7 + $0x78] sm:$0xff]
    %v190 = vld [vmem:[#allocation7 + $0x80] sm:$0xff]
    %v191 = vld [vmem:[#allocation7 + $0x88] sm:$0xff]
    %v192 = vld [vmem:[#allocation7 + $0x90] sm:$0xff]
    %v193 = vld [vmem:[#allocation7 + $0x98] sm:$0xff]
    %v194 = vld [vmem:[#allocation7 + $0xa0] sm:$0xff]
    %v195 = vld [vmem:[#allocation7 + $0xa8] sm:$0xff]
    %v196 = vld [vmem:[#allocation7 + $0xb0] sm:$0xff]
    %v197 = vld [vmem:[#allocation7 + $0xb8] sm:$0xff]
    %v198 = vld [vmem:[#allocation7 + $0xc0] sm:$0xff]
    %v199 = vld [vmem:[#allocation7 + $0xc8] sm:$0xff]
    %v200 = vld [vmem:[#allocation7 + $0xd0] sm:$0xff]
    %v201 = vld [vmem:[#allocation7 + $0xd8] sm:$0xff]
    %v202 = vld [vmem:[#allocation7 + $0xe0] sm:$0xff]
    %v203 = vld [vmem:[#allocation7 + $0xe8] sm:$0xff]
    %v204 = vld [vmem:[#allocation7 + $0xf0] sm:$0xff]
    %v205 = vld [vmem:[#allocation7 + $0xf8] sm:$0xff]
    %v238 = vunpack.c.l.b16 %v174
    %v239 = vunpack.c.h.b16 %v174
    %v240 = vunpack.c.l.b16 %v175
    %v241 = vunpack.c.h.b16 %v175
    %v242 = vunpack.c.l.b16 %v176
    %v243 = vunpack.c.h.b16 %v176
    %v244 = vunpack.c.l.b16 %v177
    %v245 = vunpack.c.h.b16 %v177
    %v246 = vunpack.c.l.b16 %v178
    %v247 = vunpack.c.h.b16 %v178
    %v248 = vunpack.c.l.b16 %v179
    %v249 = vunpack.c.h.b16 %v179
    %v250 = vunpack.c.l.b16 %v180
    %v251 = vunpack.c.h.b16 %v180
    %v252 = vunpack.c.l.b16 %v181
    %v253 = vunpack.c.h.b16 %v181
    %v254 = vunpack.c.l.b16 %v182
    %v255 = vunpack.c.h.b16 %v182
    %v256 = vunpack.c.l.b16 %v183
    %v257 = vunpack.c.h.b16 %v183
    %v258 = vunpack.c.l.b16 %v184
    %v259 = vunpack.c.h.b16 %v184
    %v260 = vunpack.c.l.b16 %v185
    %v261 = vunpack.c.h.b16 %v185
    %v262 = vunpack.c.l.b16 %v186
    %v263 = vunpack.c.h.b16 %v186
    %v264 = vunpack.c.l.b16 %v187
    %v265 = vunpack.c.h.b16 %v187
    %v266 = vunpack.c.l.b16 %v188
    %v267 = vunpack.c.h.b16 %v188
    %v268 = vunpack.c.l.b16 %v189
    %v269 = vunpack.c.h.b16 %v189
    %v270 = vunpack.c.l.b16 %v190
    %v271 = vunpack.c.h.b16 %v190
    %v272 = vunpack.c.l.b16 %v191
    %v273 = vunpack.c.h.b16 %v191
    %v274 = vunpack.c.l.b16 %v192
    %v275 = vunpack.c.h.b16 %v192
    %v276 = vunpack.c.l.b16 %v193
    %v277 = vunpack.c.h.b16 %v193
    %v278 = vunpack.c.l.b16 %v194
    %v279 = vunpack.c.h.b16 %v194
    %v280 = vunpack.c.l.b16 %v195
    %v281 = vunpack.c.h.b16 %v195
    %v282 = vunpack.c.l.b16 %v196
    %v283 = vunpack.c.h.b16 %v196
    %v284 = vunpack.c.l.b16 %v197
    %v285 = vunpack.c.h.b16 %v197
    %v286 = vunpack.c.l.b16 %v198
    %v287 = vunpack.c.h.b16 %v198
    %v288 = vunpack.c.l.b16 %v199
    %v289 = vunpack.c.h.b16 %v199
    %v290 = vunpack.c.l.b16 %v200
    %v291 = vunpack.c.h.b16 %v200
    %v292 = vunpack.c.l.b16 %v201
    %v293 = vunpack.c.h.b16 %v201
    %v294 = vunpack.c.l.b16 %v202
    %v295 = vunpack.c.h.b16 %v202
    %v296 = vunpack.c.l.b16 %v203
    %v297 = vunpack.c.h.b16 %v203
    %v298 = vunpack.c.l.b16 %v204
    %v299 = vunpack.c.h.b16 %v204
    %v300 = vunpack.c.l.b16 %v205
    %v301 = vunpack.c.h.b16 %v205
    %v302 = vpack.c.b16 %v242, %v238
    %v303 = vpack.c.b16 %v243, %v239
    %v304 = vpack.c.b16 %v244, %v240
    %v305 = vpack.c.b16 %v245, %v241
    %v306 = vpack.c.b16 %v250, %v246
    %v307 = vpack.c.b16 %v251, %v247
    %v308 = vpack.c.b16 %v252, %v248
    %v309 = vpack.c.b16 %v253, %v249
    %v310 = vpack.c.b16 %v258, %v254
    %v311 = vpack.c.b16 %v259, %v255
    %v312 = vpack.c.b16 %v260, %v256
    %v313 = vpack.c.b16 %v261, %v257
    %v314 = vpack.c.b16 %v266, %v262
    %v315 = vpack.c.b16 %v267, %v263
    %v316 = vpack.c.b16 %v268, %v264
    %v317 = vpack.c.b16 %v269, %v265
    %v318 = vpack.c.b16 %v274, %v270
    %v319 = vpack.c.b16 %v275, %v271
    %v320 = vpack.c.b16 %v276, %v272
    %v321 = vpack.c.b16 %v277, %v273
    %v322 = vpack.c.b16 %v282, %v278
    %v323 = vpack.c.b16 %v283, %v279
    %v324 = vpack.c.b16 %v284, %v280
    %v325 = vpack.c.b16 %v285, %v281
    %v326 = vpack.c.b16 %v290, %v286
    %v327 = vpack.c.b16 %v291, %v287
    %v328 = vpack.c.b16 %v292, %v288
    %v329 = vpack.c.b16 %v293, %v289
    %v330 = vpack.c.b16 %v298, %v294
    %v331 = vpack.c.b16 %v299, %v295
    %v332 = vpack.c.b16 %v300, %v296
    %v333 = vpack.c.b16 %v301, %v297
    %366 = vmatpush.bf16.msra.mxu0 %v330
    %367 = vmatpush.bf16.msra.mxu0 %v326
    %368 = vmatpush.bf16.msra.mxu0 %v322
    %369 = vmatpush.bf16.msra.mxu0 %v318
    %370 = vmatpush.bf16.msra.mxu0 %v314
    %371 = vmatpush.bf16.msra.mxu0 %v310
    %372 = vmatpush.bf16.msra.mxu0 %v306
    %373 = vmatpush.bf16.msra.mxu0 %v302
    %374 = vmatmul.bf16.gmra.mxu0 0
    %v375 = vpop.f32.mrf.mxu0
    %v376 = vadd.f32 0.0, %v375
    %v377 = vpop.f32.mrf.mxu0
    %378 = vdwg.mxu0
    %379 = vmatpush.bf16.msra.mxu0 %v331
    %380 = vmatpush.bf16.msra.mxu0 %v327
    %381 = vmatpush.bf16.msra.mxu0 %v323
    %382 = vmatpush.bf16.msra.mxu0 %v319
    %383 = vmatpush.bf16.msra.mxu0 %v315
    %384 = vmatpush.bf16.msra.mxu0 %v311
    %385 = vmatpush.bf16.msra.mxu0 %v307
    %386 = vmatpush.bf16.msra.mxu0 %v303
    %387 = vmatmul.bf16.gmra.mxu0 0
    %v388 = vpop.f32.mrf.mxu0
    %v389 = vadd.f32 0.0, %v388
    %v390 = vpop.f32.mrf.mxu0
    %391 = vdwg.mxu0
    %392 = vmatpush.bf16.msra.mxu0 %v332
    %393 = vmatpush.bf16.msra.mxu0 %v328
    %394 = vmatpush.bf16.msra.mxu0 %v324
    %395 = vmatpush.bf16.msra.mxu0 %v320
    %396 = vmatpush.bf16.msra.mxu0 %v316
    %397 = vmatpush.bf16.msra.mxu0 %v312
    %398 = vmatpush.bf16.msra.mxu0 %v308
    %399 = vmatpush.bf16.msra.mxu0 %v304
    %400 = vmatmul.bf16.gmra.mxu0 0
    %v401 = vpop.f32.mrf.mxu0
    %v402 = vadd.f32 0.0, %v401
    %v403 = vpop.f32.mrf.mxu0
    %404 = vdwg.mxu0
    %405 = vmatpush.bf16.msra.mxu0 %v333
    %406 = vmatpush.bf16.msra.mxu0 %v329
    %407 = vmatpush.bf16.msra.mxu0 %v325
    %408 = vmatpush.bf16.msra.mxu0 %v321
    %409 = vmatpush.bf16.msra.mxu0 %v317
    %410 = vmatpush.bf16.msra.mxu0 %v313
    %411 = vmatpush.bf16.msra.mxu0 %v309
    %412 = vmatpush.bf16.msra.mxu0 %v305
    %413 = vmatmul.bf16.gmra.mxu0 0
    %v414 = vpop.f32.mrf.mxu0
    %v415 = vadd.f32 0.0, %v414
    %v416 = vpop.f32.mrf.mxu0
    %417 = vdwg.mxu0
    %v418 = vadd.f32 %v112, %v376
    %v419 = vadd.f32 %v132, %v389
    %v420 = vadd.f32 %v152, %v402
    %v421 = vadd.f32 %v172, %v415
    %v422 = vmul.f32 %v418, 0.5
    %v423 = vtanh.pop %v422
    %v424 = vadd.f32 %v423, 1.0
    %v425 = vmul.f32 %v424, 0.5
    %v426 = vmul.f32 %v419, 0.5
    %v427 = vtanh.pop %v426
    %v428 = vadd.f32 %v427, 1.0
    %v429 = vmul.f32 %v428, 0.5
    %v430 = vtanh.pop %v420
    %v431 = vmul.f32 %v421, 0.5
    %v432 = vtanh.pop %v431
    %v433 = vadd.f32 %v432, 1.0
    %v434 = vmul.f32 %v433, 0.5
    %v435 = vmul.f32 %v429, 0.0
    %v436 = vmul.f32 %v425, %v430
    %v437 = vadd.f32 %v435, %v436
    %v438 = vtanh.pop %v437
    %v439 = vmul.f32 %v434, %v438
    %v440 = vld [vmem:[%s4] sm:$0x1]
    %v441 = vmul.f32 %v439, %v440
    %vm442 = vcmask 1040384
    %v443 = vsel %vm442, %v441, 0.0
    %444 = vadd.xlane.f32.xlu0 %v443
    %v445 = vpop.xlane.xlu0 %444
    %v446 = vld [vmem:[#allocation2] sm:$0x1]
    %v447 = vadd.f32 %v445, %v446
    %vm448 = vcmask 0
    %449 = vst.msk [vmem:[%s6] sm:$0x1] %vm448, %v447
    %v450 = vpack.c.bf16 %v439, %v439
    %v451 = vld [vmem:[#allocation7] sm:$0xff]
    %v452 = vld [vmem:[#allocation7 + $0x8] sm:$0xff]
    %v453 = vld [vmem:[#allocation7 + $0x10] sm:$0xff]
    %v454 = vld [vmem:[#allocation7 + $0x18] sm:$0xff]
    %v455 = vld [vmem:[#allocation7 + $0x20] sm:$0xff]
    %v456 = vld [vmem:[#allocation7 + $0x28] sm:$0xff]
    %v457 = vld [vmem:[#allocation7 + $0x30] sm:$0xff]
    %v458 = vld [vmem:[#allocation7 + $0x38] sm:$0xff]
    %v459 = vld [vmem:[#allocation7 + $0x40] sm:$0xff]
    %v460 = vld [vmem:[#allocation7 + $0x48] sm:$0xff]
    %v461 = vld [vmem:[#allocation7 + $0x50] sm:$0xff]
    %v462 = vld [vmem:[#allocation7 + $0x58] sm:$0xff]
    %v463 = vld [vmem:[#allocation7 + $0x60] sm:$0xff]
    %v464 = vld [vmem:[#allocation7 + $0x68] sm:$0xff]
    %v465 = vld [vmem:[#allocation7 + $0x70] sm:$0xff]
    %v466 = vld [vmem:[#allocation7 + $0x78] sm:$0xff]
    %v467 = vld [vmem:[#allocation7 + $0x80] sm:$0xff]
    %v468 = vld [vmem:[#allocation7 + $0x88] sm:$0xff]
    %v469 = vld [vmem:[#allocation7 + $0x90] sm:$0xff]
    %v470 = vld [vmem:[#allocation7 + $0x98] sm:$0xff]
    %v471 = vld [vmem:[#allocation7 + $0xa0] sm:$0xff]
    %v472 = vld [vmem:[#allocation7 + $0xa8] sm:$0xff]
    %v473 = vld [vmem:[#allocation7 + $0xb0] sm:$0xff]
    %v474 = vld [vmem:[#allocation7 + $0xb8] sm:$0xff]
    %v475 = vld [vmem:[#allocation7 + $0xc0] sm:$0xff]
    %v476 = vld [vmem:[#allocation7 + $0xc8] sm:$0xff]
    %v477 = vld [vmem:[#allocation7 + $0xd0] sm:$0xff]
    %v478 = vld [vmem:[#allocation7 + $0xd8] sm:$0xff]
    %v479 = vld [vmem:[#allocation7 + $0xe0] sm:$0xff]
    %v480 = vld [vmem:[#allocation7 + $0xe8] sm:$0xff]
    %v481 = vld [vmem:[#allocation7 + $0xf0] sm:$0xff]
    %v482 = vld [vmem:[#allocation7 + $0xf8] sm:$0xff]
    %v515 = vunpack.c.l.b16 %v451
    %v516 = vunpack.c.h.b16 %v451
    %v517 = vunpack.c.l.b16 %v452
    %v518 = vunpack.c.h.b16 %v452
    %v519 = vunpack.c.l.b16 %v453
    %v520 = vunpack.c.h.b16 %v453
    %v521 = vunpack.c.l.b16 %v454
    %v522 = vunpack.c.h.b16 %v454
    %v523 = vunpack.c.l.b16 %v455
    %v524 = vunpack.c.h.b16 %v455
    %v525 = vunpack.c.l.b16 %v456
    %v526 = vunpack.c.h.b16 %v456
    %v527 = vunpack.c.l.b16 %v457
    %v528 = vunpack.c.h.b16 %v457
    %v529 = vunpack.c.l.b16 %v458
    %v530 = vunpack.c.h.b16 %v458
    %v531 = vunpack.c.l.b16 %v459
    %v532 = vunpack.c.h.b16 %v459
    %v533 = vunpack.c.l.b16 %v460
    %v534 = vunpack.c.h.b16 %v460
    %v535 = vunpack.c.l.b16 %v461
    %v536 = vunpack.c.h.b16 %v461
    %v537 = vunpack.c.l.b16 %v462
    %v538 = vunpack.c.h.b16 %v462
    %v539 = vunpack.c.l.b16 %v463
    %v540 = vunpack.c.h.b16 %v463
    %v541 = vunpack.c.l.b16 %v464
    %v542 = vunpack.c.h.b16 %v464
    %v543 = vunpack.c.l.b16 %v465
    %v544 = vunpack.c.h.b16 %v465
    %v545 = vunpack.c.l.b16 %v466
    %v546 = vunpack.c.h.b16 %v466
    %v547 = vunpack.c.l.b16 %v467
    %v548 = vunpack.c.h.b16 %v467
    %v549 = vunpack.c.l.b16 %v468
    %v550 = vunpack.c.h.b16 %v468
    %v551 = vunpack.c.l.b16 %v469
    %v552 = vunpack.c.h.b16 %v469
    %v553 = vunpack.c.l.b16 %v470
    %v554 = vunpack.c.h.b16 %v470
    %v555 = vunpack.c.l.b16 %v471
    %v556 = vunpack.c.h.b16 %v471
    %v557 = vunpack.c.l.b16 %v472
    %v558 = vunpack.c.h.b16 %v472
    %v559 = vunpack.c.l.b16 %v473
    %v560 = vunpack.c.h.b16 %v473
    %v561 = vunpack.c.l.b16 %v474
    %v562 = vunpack.c.h.b16 %v474
    %v563 = vunpack.c.l.b16 %v475
    %v564 = vunpack.c.h.b16 %v475
    %v565 = vunpack.c.l.b16 %v476
    %v566 = vunpack.c.h.b16 %v476
    %v567 = vunpack.c.l.b16 %v477
    %v568 = vunpack.c.h.b16 %v477
    %v569 = vunpack.c.l.b16 %v478
    %v570 = vunpack.c.h.b16 %v478
    %v571 = vunpack.c.l.b16 %v479
    %v572 = vunpack.c.h.b16 %v479
    %v573 = vunpack.c.l.b16 %v480
    %v574 = vunpack.c.h.b16 %v480
    %v575 = vunpack.c.l.b16 %v481
    %v576 = vunpack.c.h.b16 %v481
    %v577 = vunpack.c.l.b16 %v482
    %v578 = vunpack.c.h.b16 %v482
    %v579 = vpack.c.b16 %v519, %v515
    %v580 = vpack.c.b16 %v520, %v516
    %v581 = vpack.c.b16 %v521, %v517
    %v582 = vpack.c.b16 %v522, %v518
    %v583 = vpack.c.b16 %v527, %v523
    %v584 = vpack.c.b16 %v528, %v524
    %v585 = vpack.c.b16 %v529, %v525
    %v586 = vpack.c.b16 %v530, %v526
    %v587 = vpack.c.b16 %v535, %v531
    %v588 = vpack.c.b16 %v536, %v532
    %v589 = vpack.c.b16 %v537, %v533
    %v590 = vpack.c.b16 %v538, %v534
    %v591 = vpack.c.b16 %v543, %v539
    %v592 = vpack.c.b16 %v544, %v540
    %v593 = vpack.c.b16 %v545, %v541
    %v594 = vpack.c.b16 %v546, %v542
    %v595 = vpack.c.b16 %v551, %v547
    %v596 = vpack.c.b16 %v552, %v548
    %v597 = vpack.c.b16 %v553, %v549
    %v598 = vpack.c.b16 %v554, %v550
    %v599 = vpack.c.b16 %v559, %v555
    %v600 = vpack.c.b16 %v560, %v556
    %v601 = vpack.c.b16 %v561, %v557
    %v602 = vpack.c.b16 %v562, %v558
    %v603 = vpack.c.b16 %v567, %v563
    %v604 = vpack.c.b16 %v568, %v564
    %v605 = vpack.c.b16 %v569, %v565
    %v606 = vpack.c.b16 %v570, %v566
    %v607 = vpack.c.b16 %v575, %v571
    %v608 = vpack.c.b16 %v576, %v572
    %v609 = vpack.c.b16 %v577, %v573
    %v610 = vpack.c.b16 %v578, %v574
    %643 = vmatpush.bf16.msra.mxu0 %v607
    %644 = vmatpush.bf16.msra.mxu0 %v603
    %645 = vmatpush.bf16.msra.mxu0 %v599
    %646 = vmatpush.bf16.msra.mxu0 %v595
    %647 = vmatpush.bf16.msra.mxu0 %v591
    %648 = vmatpush.bf16.msra.mxu0 %v587
    %649 = vmatpush.bf16.msra.mxu0 %v583
    %650 = vmatpush.bf16.msra.mxu0 %v579
    %651 = vmatmul.bf16.gmra.mxu0 %v450
    %v652 = vpop.f32.mrf.mxu0
    %v653 = vadd.f32 0.0, %v652
    %v654 = vpop.f32.mrf.mxu0
    %655 = vdwg.mxu0
    %656 = vmatpush.bf16.msra.mxu0 %v608
    %657 = vmatpush.bf16.msra.mxu0 %v604
    %658 = vmatpush.bf16.msra.mxu0 %v600
    %659 = vmatpush.bf16.msra.mxu0 %v596
    %660 = vmatpush.bf16.msra.mxu0 %v592
    %661 = vmatpush.bf16.msra.mxu0 %v588
    %662 = vmatpush.bf16.msra.mxu0 %v584
    %663 = vmatpush.bf16.msra.mxu0 %v580
    %664 = vmatmul.bf16.gmra.mxu0 %v450
    %v665 = vpop.f32.mrf.mxu0
    %v666 = vadd.f32 0.0, %v665
    %v667 = vpop.f32.mrf.mxu0
    %668 = vdwg.mxu0
    %669 = vmatpush.bf16.msra.mxu0 %v609
    %670 = vmatpush.bf16.msra.mxu0 %v605
    %671 = vmatpush.bf16.msra.mxu0 %v601
    %672 = vmatpush.bf16.msra.mxu0 %v597
    %673 = vmatpush.bf16.msra.mxu0 %v593
    %674 = vmatpush.bf16.msra.mxu0 %v589
    %675 = vmatpush.bf16.msra.mxu0 %v585
    %676 = vmatpush.bf16.msra.mxu0 %v581
    %677 = vmatmul.bf16.gmra.mxu0 %v450
    %v678 = vpop.f32.mrf.mxu0
    %v679 = vadd.f32 0.0, %v678
    %v680 = vpop.f32.mrf.mxu0
    %681 = vdwg.mxu0
    %682 = vmatpush.bf16.msra.mxu0 %v610
    %683 = vmatpush.bf16.msra.mxu0 %v606
    %684 = vmatpush.bf16.msra.mxu0 %v602
    %685 = vmatpush.bf16.msra.mxu0 %v598
    %686 = vmatpush.bf16.msra.mxu0 %v594
    %687 = vmatpush.bf16.msra.mxu0 %v590
    %688 = vmatpush.bf16.msra.mxu0 %v586
    %689 = vmatpush.bf16.msra.mxu0 %v582
    %690 = vmatmul.bf16.gmra.mxu0 %v450
    %v691 = vpop.f32.mrf.mxu0
    %v692 = vadd.f32 0.0, %v691
    %v693 = vpop.f32.mrf.mxu0
    %694 = vdwg.mxu0
    %v699 = vrot.slane %v653, 7
    %v700 = vrot.slane %v666, 7
    %v701 = vrot.slane %v679, 7
    %v702 = vrot.slane %v692, 7
    %v707 = vadd.f32 %v112, %v699
    %v708 = vadd.f32 %v132, %v700
    %v709 = vadd.f32 %v152, %v701
    %v710 = vadd.f32 %v172, %v702
    %v711 = vmul.f32 %v707, 0.5
    %v712 = vtanh.pop %v711
    %v713 = vadd.f32 %v712, 1.0
    %v714 = vmul.f32 %v713, 0.5
    %v715 = vmul.f32 %v708, 0.5
    %v716 = vtanh.pop %v715
    %v717 = vadd.f32 %v716, 1.0
    %v718 = vmul.f32 %v717, 0.5
    %v719 = vtanh.pop %v709
    %v720 = vmul.f32 %v710, 0.5
    %v721 = vtanh.pop %v720
    %v722 = vadd.f32 %v721, 1.0
    %v723 = vmul.f32 %v722, 0.5
    %v725 = vrot.slane %v437, 7
    %v727 = vmul.f32 %v718, %v725
    %v728 = vmul.f32 %v714, %v719
    %v729 = vadd.f32 %v727, %v728
    %v730 = vtanh.pop %v729
    %v731 = vmul.f32 %v723, %v730
    %v732 = vld [vmem:[%s4] sm:$0x1]
    %v734 = vperm.slane %v732, 0
    %v736 = vmul.f32 %v731, %v734
    %vm737 = vcmask 1041409
    %v738 = vsel %vm737, %v736, 0.0
    %739 = vadd.xlane.f32.xlu0 %v738
    %v740 = vpop.xlane.xlu0 %739
    %v741 = vld [vmem:[#allocation2] sm:$0x1]
    %v743 = vperm.slane %v741, 0
    %v745 = vadd.f32 %v740, %v743
    %vm746 = vcmask 1025
    %747 = vst.msk [vmem:[%s6] sm:$0x2] %vm746, %v745
    %v748 = vpack.c.bf16 %v731, %v731
    %v749 = vld [vmem:[#allocation7] sm:$0xff]
    %v750 = vld [vmem:[#allocation7 + $0x8] sm:$0xff]
    %v751 = vld [vmem:[#allocation7 + $0x10] sm:$0xff]
    %v752 = vld [vmem:[#allocation7 + $0x18] sm:$0xff]
    %v753 = vld [vmem:[#allocation7 + $0x20] sm:$0xff]
    %v754 = vld [vmem:[#allocation7 + $0x28] sm:$0xff]
    %v755 = vld [vmem:[#allocation7 + $0x30] sm:$0xff]
    %v756 = vld [vmem:[#allocation7 + $0x38] sm:$0xff]
    %v757 = vld [vmem:[#allocation7 + $0x40] sm:$0xff]
    %v758 = vld [vmem:[#allocation7 + $0x48] sm:$0xff]
    %v759 = vld [vmem:[#allocation7 + $0x50] sm:$0xff]
    %v760 = vld [vmem:[#allocation7 + $0x58] sm:$0xff]
    %v761 = vld [vmem:[#allocation7 + $0x60] sm:$0xff]
    %v762 = vld [vmem:[#allocation7 + $0x68] sm:$0xff]
    %v763 = vld [vmem:[#allocation7 + $0x70] sm:$0xff]
    %v764 = vld [vmem:[#allocation7 + $0x78] sm:$0xff]
    %v765 = vld [vmem:[#allocation7 + $0x80] sm:$0xff]
    %v766 = vld [vmem:[#allocation7 + $0x88] sm:$0xff]
    %v767 = vld [vmem:[#allocation7 + $0x90] sm:$0xff]
    %v768 = vld [vmem:[#allocation7 + $0x98] sm:$0xff]
    %v769 = vld [vmem:[#allocation7 + $0xa0] sm:$0xff]
    %v770 = vld [vmem:[#allocation7 + $0xa8] sm:$0xff]
    %v771 = vld [vmem:[#allocation7 + $0xb0] sm:$0xff]
    %v772 = vld [vmem:[#allocation7 + $0xb8] sm:$0xff]
    %v773 = vld [vmem:[#allocation7 + $0xc0] sm:$0xff]
    %v774 = vld [vmem:[#allocation7 + $0xc8] sm:$0xff]
    %v775 = vld [vmem:[#allocation7 + $0xd0] sm:$0xff]
    %v776 = vld [vmem:[#allocation7 + $0xd8] sm:$0xff]
    %v777 = vld [vmem:[#allocation7 + $0xe0] sm:$0xff]
    %v778 = vld [vmem:[#allocation7 + $0xe8] sm:$0xff]
    %v779 = vld [vmem:[#allocation7 + $0xf0] sm:$0xff]
    %v780 = vld [vmem:[#allocation7 + $0xf8] sm:$0xff]
    %v782 = vshrl.u32 %v748, 16
    %v817 = vunpack.c.l.b16 %v749
    %v818 = vunpack.c.h.b16 %v749
    %v819 = vunpack.c.l.b16 %v750
    %v820 = vunpack.c.h.b16 %v750
    %v821 = vunpack.c.l.b16 %v751
    %v822 = vunpack.c.h.b16 %v751
    %v823 = vunpack.c.l.b16 %v752
    %v824 = vunpack.c.h.b16 %v752
    %v825 = vunpack.c.l.b16 %v753
    %v826 = vunpack.c.h.b16 %v753
    %v827 = vunpack.c.l.b16 %v754
    %v828 = vunpack.c.h.b16 %v754
    %v829 = vunpack.c.l.b16 %v755
    %v830 = vunpack.c.h.b16 %v755
    %v831 = vunpack.c.l.b16 %v756
    %v832 = vunpack.c.h.b16 %v756
    %v833 = vunpack.c.l.b16 %v757
    %v834 = vunpack.c.h.b16 %v757
    %v835 = vunpack.c.l.b16 %v758
    %v836 = vunpack.c.h.b16 %v758
    %v837 = vunpack.c.l.b16 %v759
    %v838 = vunpack.c.h.b16 %v759
    %v839 = vunpack.c.l.b16 %v760
    %v840 = vunpack.c.h.b16 %v760
    %v841 = vunpack.c.l.b16 %v761
    %v842 = vunpack.c.h.b16 %v761
    %v843 = vunpack.c.l.b16 %v762
    %v844 = vunpack.c.h.b16 %v762
    %v845 = vunpack.c.l.b16 %v763
    %v846 = vunpack.c.h.b16 %v763
    %v847 = vunpack.c.l.b16 %v764
    %v848 = vunpack.c.h.b16 %v764
    %v849 = vunpack.c.l.b16 %v765
    %v850 = vunpack.c.h.b16 %v765
    %v851 = vunpack.c.l.b16 %v766
    %v852 = vunpack.c.h.b16 %v766
    %v853 = vunpack.c.l.b16 %v767
    %v854 = vunpack.c.h.b16 %v767
    %v855 = vunpack.c.l.b16 %v768
    %v856 = vunpack.c.h.b16 %v768
    %v857 = vunpack.c.l.b16 %v769
    %v858 = vunpack.c.h.b16 %v769
    %v859 = vunpack.c.l.b16 %v770
    %v860 = vunpack.c.h.b16 %v770
    %v861 = vunpack.c.l.b16 %v771
    %v862 = vunpack.c.h.b16 %v771
    %v863 = vunpack.c.l.b16 %v772
    %v864 = vunpack.c.h.b16 %v772
    %v865 = vunpack.c.l.b16 %v773
    %v866 = vunpack.c.h.b16 %v773
    %v867 = vunpack.c.l.b16 %v774
    %v868 = vunpack.c.h.b16 %v774
    %v869 = vunpack.c.l.b16 %v775
    %v870 = vunpack.c.h.b16 %v775
    %v871 = vunpack.c.l.b16 %v776
    %v872 = vunpack.c.h.b16 %v776
    %v873 = vunpack.c.l.b16 %v777
    %v874 = vunpack.c.h.b16 %v777
    %v875 = vunpack.c.l.b16 %v778
    %v876 = vunpack.c.h.b16 %v778
    %v877 = vunpack.c.l.b16 %v779
    %v878 = vunpack.c.h.b16 %v779
    %v879 = vunpack.c.l.b16 %v780
    %v880 = vunpack.c.h.b16 %v780
    %v881 = vpack.c.b16 %v821, %v817
    %v882 = vpack.c.b16 %v822, %v818
    %v883 = vpack.c.b16 %v823, %v819
    %v884 = vpack.c.b16 %v824, %v820
    %v885 = vpack.c.b16 %v829, %v825
    %v886 = vpack.c.b16 %v830, %v826
    %v887 = vpack.c.b16 %v831, %v827
    %v888 = vpack.c.b16 %v832, %v828
    %v889 = vpack.c.b16 %v837, %v833
    %v890 = vpack.c.b16 %v838, %v834
    %v891 = vpack.c.b16 %v839, %v835
    %v892 = vpack.c.b16 %v840, %v836
    %v893 = vpack.c.b16 %v845, %v841
    %v894 = vpack.c.b16 %v846, %v842
    %v895 = vpack.c.b16 %v847, %v843
    %v896 = vpack.c.b16 %v848, %v844
    %v897 = vpack.c.b16 %v853, %v849
    %v898 = vpack.c.b16 %v854, %v850
    %v899 = vpack.c.b16 %v855, %v851
    %v900 = vpack.c.b16 %v856, %v852
    %v901 = vpack.c.b16 %v861, %v857
    %v902 = vpack.c.b16 %v862, %v858
    %v903 = vpack.c.b16 %v863, %v859
    %v904 = vpack.c.b16 %v864, %v860
    %v905 = vpack.c.b16 %v869, %v865
    %v906 = vpack.c.b16 %v870, %v866
    %v907 = vpack.c.b16 %v871, %v867
    %v908 = vpack.c.b16 %v872, %v868
    %v909 = vpack.c.b16 %v877, %v873
    %v910 = vpack.c.b16 %v878, %v874
    %v911 = vpack.c.b16 %v879, %v875
    %v912 = vpack.c.b16 %v880, %v876
    %945 = vmatpush.bf16.msra.mxu0 %v909
    %946 = vmatpush.bf16.msra.mxu0 %v905
    %947 = vmatpush.bf16.msra.mxu0 %v901
    %948 = vmatpush.bf16.msra.mxu0 %v897
    %949 = vmatpush.bf16.msra.mxu0 %v893
    %950 = vmatpush.bf16.msra.mxu0 %v889
    %951 = vmatpush.bf16.msra.mxu0 %v885
    %952 = vmatpush.bf16.msra.mxu0 %v881
    %953 = vmatmul.bf16.gmra.mxu0 %v782
    %v954 = vpop.f32.mrf.mxu0
    %v955 = vadd.f32 0.0, %v954
    %v956 = vpop.f32.mrf.mxu0
    %957 = vdwg.mxu0
    %958 = vmatpush.bf16.msra.mxu0 %v910
    %959 = vmatpush.bf16.msra.mxu0 %v906
    %960 = vmatpush.bf16.msra.mxu0 %v902
    %961 = vmatpush.bf16.msra.mxu0 %v898
    %962 = vmatpush.bf16.msra.mxu0 %v894
    %963 = vmatpush.bf16.msra.mxu0 %v890
    %964 = vmatpush.bf16.msra.mxu0 %v886
    %965 = vmatpush.bf16.msra.mxu0 %v882
    %966 = vmatmul.bf16.gmra.mxu0 %v782
    %v967 = vpop.f32.mrf.mxu0
    %v968 = vadd.f32 0.0, %v967
    %v969 = vpop.f32.mrf.mxu0
    %970 = vdwg.mxu0
    %971 = vmatpush.bf16.msra.mxu0 %v911
    %972 = vmatpush.bf16.msra.mxu0 %v907
    %973 = vmatpush.bf16.msra.mxu0 %v903
    %974 = vmatpush.bf16.msra.mxu0 %v899
    %975 = vmatpush.bf16.msra.mxu0 %v895
    %976 = vmatpush.bf16.msra.mxu0 %v891
    %977 = vmatpush.bf16.msra.mxu0 %v887
    %978 = vmatpush.bf16.msra.mxu0 %v883
    %979 = vmatmul.bf16.gmra.mxu0 %v782
    %v980 = vpop.f32.mrf.mxu0
    %v981 = vadd.f32 0.0, %v980
    %v982 = vpop.f32.mrf.mxu0
    %983 = vdwg.mxu0
    %984 = vmatpush.bf16.msra.mxu0 %v912
    %985 = vmatpush.bf16.msra.mxu0 %v908
    %986 = vmatpush.bf16.msra.mxu0 %v904
    %987 = vmatpush.bf16.msra.mxu0 %v900
    %988 = vmatpush.bf16.msra.mxu0 %v896
    %989 = vmatpush.bf16.msra.mxu0 %v892
    %990 = vmatpush.bf16.msra.mxu0 %v888
    %991 = vmatpush.bf16.msra.mxu0 %v884
    %992 = vmatmul.bf16.gmra.mxu0 %v782
    %v993 = vpop.f32.mrf.mxu0
    %v994 = vadd.f32 0.0, %v993
    %v995 = vpop.f32.mrf.mxu0
    %996 = vdwg.mxu0
    %v1001 = vrot.slane %v955, 6
    %v1002 = vrot.slane %v968, 6
    %v1003 = vrot.slane %v981, 6
    %v1004 = vrot.slane %v994, 6
    %v1009 = vadd.f32 %v112, %v1001
    %v1010 = vadd.f32 %v132, %v1002
    %v1011 = vadd.f32 %v152, %v1003
    %v1012 = vadd.f32 %v172, %v1004
    %v1013 = vmul.f32 %v1009, 0.5
    %v1014 = vtanh.pop %v1013
    %v1015 = vadd.f32 %v1014, 1.0
    %v1016 = vmul.f32 %v1015, 0.5
    %v1017 = vmul.f32 %v1010, 0.5
    %v1018 = vtanh.pop %v1017
    %v1019 = vadd.f32 %v1018, 1.0
    %v1020 = vmul.f32 %v1019, 0.5
    %v1021 = vtanh.pop %v1011
    %v1022 = vmul.f32 %v1012, 0.5
    %v1023 = vtanh.pop %v1022
    %v1024 = vadd.f32 %v1023, 1.0
    %v1025 = vmul.f32 %v1024, 0.5
    %v1027 = vrot.slane %v729, 7
    %v1029 = vmul.f32 %v1020, %v1027
    %v1030 = vmul.f32 %v1016, %v1021
    %v1031 = vadd.f32 %v1029, %v1030
    %v1032 = vtanh.pop %v1031
    %v1033 = vmul.f32 %v1025, %v1032
    %v1034 = vld [vmem:[%s4] sm:$0x1]
    %v1036 = vperm.slane %v1034, 0
    %v1038 = vmul.f32 %v1033, %v1036
    %vm1039 = vcmask 1042434
    %v1040 = vsel %vm1039, %v1038, 0.0
    %1041 = vadd.xlane.f32.xlu0 %v1040
    %v1042 = vpop.xlane.xlu0 %1041
    %v1043 = vld [vmem:[#allocation2] sm:$0x1]
    %v1045 = vperm.slane %v1043, 0
    %v1047 = vadd.f32 %v1042, %v1045
    %vm1048 = vcmask 2050
    %1049 = vst.msk [vmem:[%s6] sm:$0x4] %vm1048, %v1047
    %v1050 = vpack.c.bf16 %v1033, %v1033
    %v1051 = vld [vmem:[#allocation7] sm:$0xff]
    %v1052 = vld [vmem:[#allocation7 + $0x8] sm:$0xff]
    %v1053 = vld [vmem:[#allocation7 + $0x10] sm:$0xff]
    %v1054 = vld [vmem:[#allocation7 + $0x18] sm:$0xff]
    %v1055 = vld [vmem:[#allocation7 + $0x20] sm:$0xff]
    %v1056 = vld [vmem:[#allocation7 + $0x28] sm:$0xff]
    %v1057 = vld [vmem:[#allocation7 + $0x30] sm:$0xff]
    %v1058 = vld [vmem:[#allocation7 + $0x38] sm:$0xff]
    %v1059 = vld [vmem:[#allocation7 + $0x40] sm:$0xff]
    %v1060 = vld [vmem:[#allocation7 + $0x48] sm:$0xff]
    %v1061 = vld [vmem:[#allocation7 + $0x50] sm:$0xff]
    %v1062 = vld [vmem:[#allocation7 + $0x58] sm:$0xff]
    %v1063 = vld [vmem:[#allocation7 + $0x60] sm:$0xff]
    %v1064 = vld [vmem:[#allocation7 + $0x68] sm:$0xff]
    %v1065 = vld [vmem:[#allocation7 + $0x70] sm:$0xff]
    %v1066 = vld [vmem:[#allocation7 + $0x78] sm:$0xff]
    %v1067 = vld [vmem:[#allocation7 + $0x80] sm:$0xff]
    %v1068 = vld [vmem:[#allocation7 + $0x88] sm:$0xff]
    %v1069 = vld [vmem:[#allocation7 + $0x90] sm:$0xff]
    %v1070 = vld [vmem:[#allocation7 + $0x98] sm:$0xff]
    %v1071 = vld [vmem:[#allocation7 + $0xa0] sm:$0xff]
    %v1072 = vld [vmem:[#allocation7 + $0xa8] sm:$0xff]
    %v1073 = vld [vmem:[#allocation7 + $0xb0] sm:$0xff]
    %v1074 = vld [vmem:[#allocation7 + $0xb8] sm:$0xff]
    %v1075 = vld [vmem:[#allocation7 + $0xc0] sm:$0xff]
    %v1076 = vld [vmem:[#allocation7 + $0xc8] sm:$0xff]
    %v1077 = vld [vmem:[#allocation7 + $0xd0] sm:$0xff]
    %v1078 = vld [vmem:[#allocation7 + $0xd8] sm:$0xff]
    %v1079 = vld [vmem:[#allocation7 + $0xe0] sm:$0xff]
    %v1080 = vld [vmem:[#allocation7 + $0xe8] sm:$0xff]
    %v1081 = vld [vmem:[#allocation7 + $0xf0] sm:$0xff]
    %v1082 = vld [vmem:[#allocation7 + $0xf8] sm:$0xff]
    %v1084 = vrot.slane %v1050, 1
    %v1118 = vunpack.c.l.b16 %v1051
    %v1119 = vunpack.c.h.b16 %v1051
    %v1120 = vunpack.c.l.b16 %v1052
    %v1121 = vunpack.c.h.b16 %v1052
    %v1122 = vunpack.c.l.b16 %v1053
    %v1123 = vunpack.c.h.b16 %v1053
    %v1124 = vunpack.c.l.b16 %v1054
    %v1125 = vunpack.c.h.b16 %v1054
    %v1126 = vunpack.c.l.b16 %v1055
    %v1127 = vunpack.c.h.b16 %v1055
    %v1128 = vunpack.c.l.b16 %v1056
    %v1129 = vunpack.c.h.b16 %v1056
    %v1130 = vunpack.c.l.b16 %v1057
    %v1131 = vunpack.c.h.b16 %v1057
    %v1132 = vunpack.c.l.b16 %v1058
    %v1133 = vunpack.c.h.b16 %v1058
    %v1134 = vunpack.c.l.b16 %v1059
    %v1135 = vunpack.c.h.b16 %v1059
    %v1136 = vunpack.c.l.b16 %v1060
    %v1137 = vunpack.c.h.b16 %v1060
    %v1138 = vunpack.c.l.b16 %v1061
    %v1139 = vunpack.c.h.b16 %v1061
    %v1140 = vunpack.c.l.b16 %v1062
    %v1141 = vunpack.c.h.b16 %v1062
    %v1142 = vunpack.c.l.b16 %v1063
    %v1143 = vunpack.c.h.b16 %v1063
    %v1144 = vunpack.c.l.b16 %v1064
    %v1145 = vunpack.c.h.b16 %v1064
    %v1146 = vunpack.c.l.b16 %v1065
    %v1147 = vunpack.c.h.b16 %v1065
    %v1148 = vunpack.c.l.b16 %v1066
    %v1149 = vunpack.c.h.b16 %v1066
    %v1150 = vunpack.c.l.b16 %v1067
    %v1151 = vunpack.c.h.b16 %v1067
    %v1152 = vunpack.c.l.b16 %v1068
    %v1153 = vunpack.c.h.b16 %v1068
    %v1154 = vunpack.c.l.b16 %v1069
    %v1155 = vunpack.c.h.b16 %v1069
    %v1156 = vunpack.c.l.b16 %v1070
    %v1157 = vunpack.c.h.b16 %v1070
    %v1158 = vunpack.c.l.b16 %v1071
    %v1159 = vunpack.c.h.b16 %v1071
    %v1160 = vunpack.c.l.b16 %v1072
    %v1161 = vunpack.c.h.b16 %v1072
    %v1162 = vunpack.c.l.b16 %v1073
    %v1163 = vunpack.c.h.b16 %v1073
    %v1164 = vunpack.c.l.b16 %v1074
    %v1165 = vunpack.c.h.b16 %v1074
    %v1166 = vunpack.c.l.b16 %v1075
    %v1167 = vunpack.c.h.b16 %v1075
    %v1168 = vunpack.c.l.b16 %v1076
    %v1169 = vunpack.c.h.b16 %v1076
    %v1170 = vunpack.c.l.b16 %v1077
    %v1171 = vunpack.c.h.b16 %v1077
    %v1172 = vunpack.c.l.b16 %v1078
    %v1173 = vunpack.c.h.b16 %v1078
    %v1174 = vunpack.c.l.b16 %v1079
    %v1175 = vunpack.c.h.b16 %v1079
    %v1176 = vunpack.c.l.b16 %v1080
    %v1177 = vunpack.c.h.b16 %v1080
    %v1178 = vunpack.c.l.b16 %v1081
    %v1179 = vunpack.c.h.b16 %v1081
    %v1180 = vunpack.c.l.b16 %v1082
    %v1181 = vunpack.c.h.b16 %v1082
    %v1182 = vpack.c.b16 %v1122, %v1118
    %v1183 = vpack.c.b16 %v1123, %v1119
    %v1184 = vpack.c.b16 %v1124, %v1120
    %v1185 = vpack.c.b16 %v1125, %v1121
    %v1186 = vpack.c.b16 %v1130, %v1126
    %v1187 = vpack.c.b16 %v1131, %v1127
    %v1188 = vpack.c.b16 %v1132, %v1128
    %v1189 = vpack.c.b16 %v1133, %v1129
    %v1190 = vpack.c.b16 %v1138, %v1134
    %v1191 = vpack.c.b16 %v1139, %v1135
    %v1192 = vpack.c.b16 %v1140, %v1136
    %v1193 = vpack.c.b16 %v1141, %v1137
    %v1194 = vpack.c.b16 %v1146, %v1142
    %v1195 = vpack.c.b16 %v1147, %v1143
    %v1196 = vpack.c.b16 %v1148, %v1144
    %v1197 = vpack.c.b16 %v1149, %v1145
    %v1198 = vpack.c.b16 %v1154, %v1150
    %v1199 = vpack.c.b16 %v1155, %v1151
    %v1200 = vpack.c.b16 %v1156, %v1152
    %v1201 = vpack.c.b16 %v1157, %v1153
    %v1202 = vpack.c.b16 %v1162, %v1158
    %v1203 = vpack.c.b16 %v1163, %v1159
    %v1204 = vpack.c.b16 %v1164, %v1160
    %v1205 = vpack.c.b16 %v1165, %v1161
    %v1206 = vpack.c.b16 %v1170, %v1166
    %v1207 = vpack.c.b16 %v1171, %v1167
    %v1208 = vpack.c.b16 %v1172, %v1168
    %v1209 = vpack.c.b16 %v1173, %v1169
    %v1210 = vpack.c.b16 %v1178, %v1174
    %v1211 = vpack.c.b16 %v1179, %v1175
    %v1212 = vpack.c.b16 %v1180, %v1176
    %v1213 = vpack.c.b16 %v1181, %v1177
    %1246 = vmatpush.bf16.msra.mxu0 %v1210
    %1247 = vmatpush.bf16.msra.mxu0 %v1206
    %1248 = vmatpush.bf16.msra.mxu0 %v1202
    %1249 = vmatpush.bf16.msra.mxu0 %v1198
    %1250 = vmatpush.bf16.msra.mxu0 %v1194
    %1251 = vmatpush.bf16.msra.mxu0 %v1190
    %1252 = vmatpush.bf16.msra.mxu0 %v1186
    %1253 = vmatpush.bf16.msra.mxu0 %v1182
    %1254 = vmatmul.bf16.gmra.mxu0 %v1084
    %v1255 = vpop.f32.mrf.mxu0
    %v1256 = vadd.f32 0.0, %v1255
    %v1257 = vpop.f32.mrf.mxu0
    %1258 = vdwg.mxu0
    %1259 = vmatpush.bf16.msra.mxu0 %v1211
    %1260 = vmatpush.bf16.msra.mxu0 %v1207
    %1261 = vmatpush.bf16.msra.mxu0 %v1203
    %1262 = vmatpush.bf16.msra.mxu0 %v1199
    %1263 = vmatpush.bf16.msra.mxu0 %v1195
    %1264 = vmatpush.bf16.msra.mxu0 %v1191
    %1265 = vmatpush.bf16.msra.mxu0 %v1187
    %1266 = vmatpush.bf16.msra.mxu0 %v1183
    %1267 = vmatmul.bf16.gmra.mxu0 %v1084
    %v1268 = vpop.f32.mrf.mxu0
    %v1269 = vadd.f32 0.0, %v1268
    %v1270 = vpop.f32.mrf.mxu0
    %1271 = vdwg.mxu0
    %1272 = vmatpush.bf16.msra.mxu0 %v1212
    %1273 = vmatpush.bf16.msra.mxu0 %v1208
    %1274 = vmatpush.bf16.msra.mxu0 %v1204
    %1275 = vmatpush.bf16.msra.mxu0 %v1200
    %1276 = vmatpush.bf16.msra.mxu0 %v1196
    %1277 = vmatpush.bf16.msra.mxu0 %v1192
    %1278 = vmatpush.bf16.msra.mxu0 %v1188
    %1279 = vmatpush.bf16.msra.mxu0 %v1184
    %1280 = vmatmul.bf16.gmra.mxu0 %v1084
    %v1281 = vpop.f32.mrf.mxu0
    %v1282 = vadd.f32 0.0, %v1281
    %v1283 = vpop.f32.mrf.mxu0
    %1284 = vdwg.mxu0
    %1285 = vmatpush.bf16.msra.mxu0 %v1213
    %1286 = vmatpush.bf16.msra.mxu0 %v1209
    %1287 = vmatpush.bf16.msra.mxu0 %v1205
    %1288 = vmatpush.bf16.msra.mxu0 %v1201
    %1289 = vmatpush.bf16.msra.mxu0 %v1197
    %1290 = vmatpush.bf16.msra.mxu0 %v1193
    %1291 = vmatpush.bf16.msra.mxu0 %v1189
    %1292 = vmatpush.bf16.msra.mxu0 %v1185
    %1293 = vmatmul.bf16.gmra.mxu0 %v1084
    %v1294 = vpop.f32.mrf.mxu0
    %v1295 = vadd.f32 0.0, %v1294
    %v1296 = vpop.f32.mrf.mxu0
    %1297 = vdwg.mxu0
    %v1302 = vrot.slane %v1256, 5
    %v1303 = vrot.slane %v1269, 5
    %v1304 = vrot.slane %v1282, 5
    %v1305 = vrot.slane %v1295, 5
    %v1310 = vadd.f32 %v112, %v1302
    %v1311 = vadd.f32 %v132, %v1303
    %v1312 = vadd.f32 %v152, %v1304
    %v1313 = vadd.f32 %v172, %v1305
    %v1314 = vmul.f32 %v1310, 0.5
    %v1315 = vtanh.pop %v1314
    %v1316 = vadd.f32 %v1315, 1.0
    %v1317 = vmul.f32 %v1316, 0.5
    %v1318 = vmul.f32 %v1311, 0.5
    %v1319 = vtanh.pop %v1318
    %v1320 = vadd.f32 %v1319, 1.0
    %v1321 = vmul.f32 %v1320, 0.5
    %v1322 = vtanh.pop %v1312
    %v1323 = vmul.f32 %v1313, 0.5
    %v1324 = vtanh.pop %v1323
    %v1325 = vadd.f32 %v1324, 1.0
    %v1326 = vmul.f32 %v1325, 0.5
    %v1328 = vrot.slane %v1031, 7
    %v1330 = vmul.f32 %v1321, %v1328
    %v1331 = vmul.f32 %v1317, %v1322
    %v1332 = vadd.f32 %v1330, %v1331
    %v1333 = vtanh.pop %v1332
    %v1334 = vmul.f32 %v1326, %v1333
    %v1335 = vld [vmem:[%s4] sm:$0x1]
    %v1337 = vperm.slane %v1335, 0
    %v1339 = vmul.f32 %v1334, %v1337
    %vm1340 = vcmask 1043459
    %v1341 = vsel %vm1340, %v1339, 0.0
    %1342 = vadd.xlane.f32.xlu0 %v1341
    %v1343 = vpop.xlane.xlu0 %1342
    %v1344 = vld [vmem:[#allocation2] sm:$0x1]
    %v1346 = vperm.slane %v1344, 0
    %v1348 = vadd.f32 %v1343, %v1346
    %vm1349 = vcmask 3075
    %1350 = vst.msk [vmem:[%s6] sm:$0x8] %vm1349, %v1348
    %v1351 = vpack.c.bf16 %v1334, %v1334
    %v1352 = vld [vmem:[#allocation7] sm:$0xff]
    %v1353 = vld [vmem:[#allocation7 + $0x8] sm:$0xff]
    %v1354 = vld [vmem:[#allocation7 + $0x10] sm:$0xff]
    %v1355 = vld [vmem:[#allocation7 + $0x18] sm:$0xff]
    %v1356 = vld [vmem:[#allocation7 + $0x20] sm:$0xff]
    %v1357 = vld [vmem:[#allocation7 + $0x28] sm:$0xff]
    %v1358 = vld [vmem:[#allocation7 + $0x30] sm:$0xff]
    %v1359 = vld [vmem:[#allocation7 + $0x38] sm:$0xff]
    %v1360 = vld [vmem:[#allocation7 + $0x40] sm:$0xff]
    %v1361 = vld [vmem:[#allocation7 + $0x48] sm:$0xff]
    %v1362 = vld [vmem:[#allocation7 + $0x50] sm:$0xff]
    %v1363 = vld [vmem:[#allocation7 + $0x58] sm:$0xff]
    %v1364 = vld [vmem:[#allocation7 + $0x60] sm:$0xff]
    %v1365 = vld [vmem:[#allocation7 + $0x68] sm:$0xff]
    %v1366 = vld [vmem:[#allocation7 + $0x70] sm:$0xff]
    %v1367 = vld [vmem:[#allocation7 + $0x78] sm:$0xff]
    %v1368 = vld [vmem:[#allocation7 + $0x80] sm:$0xff]
    %v1369 = vld [vmem:[#allocation7 + $0x88] sm:$0xff]
    %v1370 = vld [vmem:[#allocation7 + $0x90] sm:$0xff]
    %v1371 = vld [vmem:[#allocation7 + $0x98] sm:$0xff]
    %v1372 = vld [vmem:[#allocation7 + $0xa0] sm:$0xff]
    %v1373 = vld [vmem:[#allocation7 + $0xa8] sm:$0xff]
    %v1374 = vld [vmem:[#allocation7 + $0xb0] sm:$0xff]
    %v1375 = vld [vmem:[#allocation7 + $0xb8] sm:$0xff]
    %v1376 = vld [vmem:[#allocation7 + $0xc0] sm:$0xff]
    %v1377 = vld [vmem:[#allocation7 + $0xc8] sm:$0xff]
    %v1378 = vld [vmem:[#allocation7 + $0xd0] sm:$0xff]
    %v1379 = vld [vmem:[#allocation7 + $0xd8] sm:$0xff]
    %v1380 = vld [vmem:[#allocation7 + $0xe0] sm:$0xff]
    %v1381 = vld [vmem:[#allocation7 + $0xe8] sm:$0xff]
    %v1382 = vld [vmem:[#allocation7 + $0xf0] sm:$0xff]
    %v1383 = vld [vmem:[#allocation7 + $0xf8] sm:$0xff]
    %v1385 = vshrl.u32 %v1351, 16
    %v1387 = vrot.slane %v1385, 1
    %v1421 = vunpack.c.l.b16 %v1352
    %v1422 = vunpack.c.h.b16 %v1352
    %v1423 = vunpack.c.l.b16 %v1353
    %v1424 = vunpack.c.h.b16 %v1353
    %v1425 = vunpack.c.l.b16 %v1354
    %v1426 = vunpack.c.h.b16 %v1354
    %v1427 = vunpack.c.l.b16 %v1355
    %v1428 = vunpack.c.h.b16 %v1355
    %v1429 = vunpack.c.l.b16 %v1356
    %v1430 = vunpack.c.h.b16 %v1356
    %v1431 = vunpack.c.l.b16 %v1357
    %v1432 = vunpack.c.h.b16 %v1357
    %v1433 = vunpack.c.l.b16 %v1358
    %v1434 = vunpack.c.h.b16 %v1358
    %v1435 = vunpack.c.l.b16 %v1359
    %v1436 = vunpack.c.h.b16 %v1359
    %v1437 = vunpack.c.l.b16 %v1360
    %v1438 = vunpack.c.h.b16 %v1360
    %v1439 = vunpack.c.l.b16 %v1361
    %v1440 = vunpack.c.h.b16 %v1361
    %v1441 = vunpack.c.l.b16 %v1362
    %v1442 = vunpack.c.h.b16 %v1362
    %v1443 = vunpack.c.l.b16 %v1363
    %v1444 = vunpack.c.h.b16 %v1363
    %v1445 = vunpack.c.l.b16 %v1364
    %v1446 = vunpack.c.h.b16 %v1364
    %v1447 = vunpack.c.l.b16 %v1365
    %v1448 = vunpack.c.h.b16 %v1365
    %v1449 = vunpack.c.l.b16 %v1366
    %v1450 = vunpack.c.h.b16 %v1366
    %v1451 = vunpack.c.l.b16 %v1367
    %v1452 = vunpack.c.h.b16 %v1367
    %v1453 = vunpack.c.l.b16 %v1368
    %v1454 = vunpack.c.h.b16 %v1368
    %v1455 = vunpack.c.l.b16 %v1369
    %v1456 = vunpack.c.h.b16 %v1369
    %v1457 = vunpack.c.l.b16 %v1370
    %v1458 = vunpack.c.h.b16 %v1370
    %v1459 = vunpack.c.l.b16 %v1371
    %v1460 = vunpack.c.h.b16 %v1371
    %v1461 = vunpack.c.l.b16 %v1372
    %v1462 = vunpack.c.h.b16 %v1372
    %v1463 = vunpack.c.l.b16 %v1373
    %v1464 = vunpack.c.h.b16 %v1373
    %v1465 = vunpack.c.l.b16 %v1374
    %v1466 = vunpack.c.h.b16 %v1374
    %v1467 = vunpack.c.l.b16 %v1375
    %v1468 = vunpack.c.h.b16 %v1375
    %v1469 = vunpack.c.l.b16 %v1376
    %v1470 = vunpack.c.h.b16 %v1376
    %v1471 = vunpack.c.l.b16 %v1377
    %v1472 = vunpack.c.h.b16 %v1377
    %v1473 = vunpack.c.l.b16 %v1378
    %v1474 = vunpack.c.h.b16 %v1378
    %v1475 = vunpack.c.l.b16 %v1379
    %v1476 = vunpack.c.h.b16 %v1379
    %v1477 = vunpack.c.l.b16 %v1380
    %v1478 = vunpack.c.h.b16 %v1380
    %v1479 = vunpack.c.l.b16 %v1381
    %v1480 = vunpack.c.h.b16 %v1381
    %v1481 = vunpack.c.l.b16 %v1382
    %v1482 = vunpack.c.h.b16 %v1382
    %v1483 = vunpack.c.l.b16 %v1383
    %v1484 = vunpack.c.h.b16 %v1383
    %v1485 = vpack.c.b16 %v1425, %v1421
    %v1486 = vpack.c.b16 %v1426, %v1422
    %v1487 = vpack.c.b16 %v1427, %v1423
    %v1488 = vpack.c.b16 %v1428, %v1424
    %v1489 = vpack.c.b16 %v1433, %v1429
    %v1490 = vpack.c.b16 %v1434, %v1430
    %v1491 = vpack.c.b16 %v1435, %v1431
    %v1492 = vpack.c.b16 %v1436, %v1432
    %v1493 = vpack.c.b16 %v1441, %v1437
    %v1494 = vpack.c.b16 %v1442, %v1438
    %v1495 = vpack.c.b16 %v1443, %v1439
    %v1496 = vpack.c.b16 %v1444, %v1440
    %v1497 = vpack.c.b16 %v1449, %v1445
    %v1498 = vpack.c.b16 %v1450, %v1446
    %v1499 = vpack.c.b16 %v1451, %v1447
    %v1500 = vpack.c.b16 %v1452, %v1448
    %v1501 = vpack.c.b16 %v1457, %v1453
    %v1502 = vpack.c.b16 %v1458, %v1454
    %v1503 = vpack.c.b16 %v1459, %v1455
    %v1504 = vpack.c.b16 %v1460, %v1456
    %v1505 = vpack.c.b16 %v1465, %v1461
    %v1506 = vpack.c.b16 %v1466, %v1462
    %v1507 = vpack.c.b16 %v1467, %v1463
    %v1508 = vpack.c.b16 %v1468, %v1464
    %v1509 = vpack.c.b16 %v1473, %v1469
    %v1510 = vpack.c.b16 %v1474, %v1470
    %v1511 = vpack.c.b16 %v1475, %v1471
    %v1512 = vpack.c.b16 %v1476, %v1472
    %v1513 = vpack.c.b16 %v1481, %v1477
    %v1514 = vpack.c.b16 %v1482, %v1478
    %v1515 = vpack.c.b16 %v1483, %v1479
    %v1516 = vpack.c.b16 %v1484, %v1480
    %1549 = vmatpush.bf16.msra.mxu0 %v1513
    %1550 = vmatpush.bf16.msra.mxu0 %v1509
    %1551 = vmatpush.bf16.msra.mxu0 %v1505
    %1552 = vmatpush.bf16.msra.mxu0 %v1501
    %1553 = vmatpush.bf16.msra.mxu0 %v1497
    %1554 = vmatpush.bf16.msra.mxu0 %v1493
    %1555 = vmatpush.bf16.msra.mxu0 %v1489
    %1556 = vmatpush.bf16.msra.mxu0 %v1485
    %1557 = vmatmul.bf16.gmra.mxu0 %v1387
    %v1558 = vpop.f32.mrf.mxu0
    %v1559 = vadd.f32 0.0, %v1558
    %v1560 = vpop.f32.mrf.mxu0
    %1561 = vdwg.mxu0
    %1562 = vmatpush.bf16.msra.mxu0 %v1514
    %1563 = vmatpush.bf16.msra.mxu0 %v1510
    %1564 = vmatpush.bf16.msra.mxu0 %v1506
    %1565 = vmatpush.bf16.msra.mxu0 %v1502
    %1566 = vmatpush.bf16.msra.mxu0 %v1498
    %1567 = vmatpush.bf16.msra.mxu0 %v1494
    %1568 = vmatpush.bf16.msra.mxu0 %v1490
    %1569 = vmatpush.bf16.msra.mxu0 %v1486
    %1570 = vmatmul.bf16.gmra.mxu0 %v1387
    %v1571 = vpop.f32.mrf.mxu0
    %v1572 = vadd.f32 0.0, %v1571
    %v1573 = vpop.f32.mrf.mxu0
    %1574 = vdwg.mxu0
    %1575 = vmatpush.bf16.msra.mxu0 %v1515
    %1576 = vmatpush.bf16.msra.mxu0 %v1511
    %1577 = vmatpush.bf16.msra.mxu0 %v1507
    %1578 = vmatpush.bf16.msra.mxu0 %v1503
    %1579 = vmatpush.bf16.msra.mxu0 %v1499
    %1580 = vmatpush.bf16.msra.mxu0 %v1495
    %1581 = vmatpush.bf16.msra.mxu0 %v1491
    %1582 = vmatpush.bf16.msra.mxu0 %v1487
    %1583 = vmatmul.bf16.gmra.mxu0 %v1387
    %v1584 = vpop.f32.mrf.mxu0
    %v1585 = vadd.f32 0.0, %v1584
    %v1586 = vpop.f32.mrf.mxu0
    %1587 = vdwg.mxu0
    %1588 = vmatpush.bf16.msra.mxu0 %v1516
    %1589 = vmatpush.bf16.msra.mxu0 %v1512
    %1590 = vmatpush.bf16.msra.mxu0 %v1508
    %1591 = vmatpush.bf16.msra.mxu0 %v1504
    %1592 = vmatpush.bf16.msra.mxu0 %v1500
    %1593 = vmatpush.bf16.msra.mxu0 %v1496
    %1594 = vmatpush.bf16.msra.mxu0 %v1492
    %1595 = vmatpush.bf16.msra.mxu0 %v1488
    %1596 = vmatmul.bf16.gmra.mxu0 %v1387
    %v1597 = vpop.f32.mrf.mxu0
    %v1598 = vadd.f32 0.0, %v1597
    %v1599 = vpop.f32.mrf.mxu0
    %1600 = vdwg.mxu0
    %v1605 = vrot.slane %v1559, 4
    %v1606 = vrot.slane %v1572, 4
    %v1607 = vrot.slane %v1585, 4
    %v1608 = vrot.slane %v1598, 4
    %v1613 = vadd.f32 %v112, %v1605
    %v1614 = vadd.f32 %v132, %v1606
    %v1615 = vadd.f32 %v152, %v1607
    %v1616 = vadd.f32 %v172, %v1608
    %v1617 = vmul.f32 %v1613, 0.5
    %v1618 = vtanh.pop %v1617
    %v1619 = vadd.f32 %v1618, 1.0
    %v1620 = vmul.f32 %v1619, 0.5
    %v1621 = vmul.f32 %v1614, 0.5
    %v1622 = vtanh.pop %v1621
    %v1623 = vadd.f32 %v1622, 1.0
    %v1624 = vmul.f32 %v1623, 0.5
    %v1625 = vtanh.pop %v1615
    %v1626 = vmul.f32 %v1616, 0.5
    %v1627 = vtanh.pop %v1626
    %v1628 = vadd.f32 %v1627, 1.0
    %v1629 = vmul.f32 %v1628, 0.5
    %v1631 = vrot.slane %v1332, 7
    %v1633 = vmul.f32 %v1624, %v1631
    %v1634 = vmul.f32 %v1620, %v1625
    %v1635 = vadd.f32 %v1633, %v1634
    %v1636 = vtanh.pop %v1635
    %v1637 = vmul.f32 %v1629, %v1636
    %v1638 = vld [vmem:[%s4] sm:$0x1]
    %v1640 = vperm.slane %v1638, 0
    %v1642 = vmul.f32 %v1637, %v1640
    %vm1643 = vcmask 1044484
    %v1644 = vsel %vm1643, %v1642, 0.0
    %1645 = vadd.xlane.f32.xlu0 %v1644
    %v1646 = vpop.xlane.xlu0 %1645
    %v1647 = vld [vmem:[#allocation2] sm:$0x1]
    %v1649 = vperm.slane %v1647, 0
    %v1651 = vadd.f32 %v1646, %v1649
    %vm1652 = vcmask 4100
    %1653 = vst.msk [vmem:[%s6] sm:$0x10] %vm1652, %v1651
    %v1654 = vpack.c.bf16 %v1637, %v1637
    %v1655 = vld [vmem:[#allocation7] sm:$0xff]
    %v1656 = vld [vmem:[#allocation7 + $0x8] sm:$0xff]
    %v1657 = vld [vmem:[#allocation7 + $0x10] sm:$0xff]
    %v1658 = vld [vmem:[#allocation7 + $0x18] sm:$0xff]
    %v1659 = vld [vmem:[#allocation7 + $0x20] sm:$0xff]
    %v1660 = vld [vmem:[#allocation7 + $0x28] sm:$0xff]
    %v1661 = vld [vmem:[#allocation7 + $0x30] sm:$0xff]
    %v1662 = vld [vmem:[#allocation7 + $0x38] sm:$0xff]
    %v1663 = vld [vmem:[#allocation7 + $0x40] sm:$0xff]
    %v1664 = vld [vmem:[#allocation7 + $0x48] sm:$0xff]
    %v1665 = vld [vmem:[#allocation7 + $0x50] sm:$0xff]
    %v1666 = vld [vmem:[#allocation7 + $0x58] sm:$0xff]
    %v1667 = vld [vmem:[#allocation7 + $0x60] sm:$0xff]
    %v1668 = vld [vmem:[#allocation7 + $0x68] sm:$0xff]
    %v1669 = vld [vmem:[#allocation7 + $0x70] sm:$0xff]
    %v1670 = vld [vmem:[#allocation7 + $0x78] sm:$0xff]
    %v1671 = vld [vmem:[#allocation7 + $0x80] sm:$0xff]
    %v1672 = vld [vmem:[#allocation7 + $0x88] sm:$0xff]
    %v1673 = vld [vmem:[#allocation7 + $0x90] sm:$0xff]
    %v1674 = vld [vmem:[#allocation7 + $0x98] sm:$0xff]
    %v1675 = vld [vmem:[#allocation7 + $0xa0] sm:$0xff]
    %v1676 = vld [vmem:[#allocation7 + $0xa8] sm:$0xff]
    %v1677 = vld [vmem:[#allocation7 + $0xb0] sm:$0xff]
    %v1678 = vld [vmem:[#allocation7 + $0xb8] sm:$0xff]
    %v1679 = vld [vmem:[#allocation7 + $0xc0] sm:$0xff]
    %v1680 = vld [vmem:[#allocation7 + $0xc8] sm:$0xff]
    %v1681 = vld [vmem:[#allocation7 + $0xd0] sm:$0xff]
    %v1682 = vld [vmem:[#allocation7 + $0xd8] sm:$0xff]
    %v1683 = vld [vmem:[#allocation7 + $0xe0] sm:$0xff]
    %v1684 = vld [vmem:[#allocation7 + $0xe8] sm:$0xff]
    %v1685 = vld [vmem:[#allocation7 + $0xf0] sm:$0xff]
    %v1686 = vld [vmem:[#allocation7 + $0xf8] sm:$0xff]
    %v1688 = vrot.slane %v1654, 2
    %v1722 = vunpack.c.l.b16 %v1655
    %v1723 = vunpack.c.h.b16 %v1655
    %v1724 = vunpack.c.l.b16 %v1656
    %v1725 = vunpack.c.h.b16 %v1656
    %v1726 = vunpack.c.l.b16 %v1657
    %v1727 = vunpack.c.h.b16 %v1657
    %v1728 = vunpack.c.l.b16 %v1658
    %v1729 = vunpack.c.h.b16 %v1658
    %v1730 = vunpack.c.l.b16 %v1659
    %v1731 = vunpack.c.h.b16 %v1659
    %v1732 = vunpack.c.l.b16 %v1660
    %v1733 = vunpack.c.h.b16 %v1660
    %v1734 = vunpack.c.l.b16 %v1661
    %v1735 = vunpack.c.h.b16 %v1661
    %v1736 = vunpack.c.l.b16 %v1662
    %v1737 = vunpack.c.h.b16 %v1662
    %v1738 = vunpack.c.l.b16 %v1663
    %v1739 = vunpack.c.h.b16 %v1663
    %v1740 = vunpack.c.l.b16 %v1664
    %v1741 = vunpack.c.h.b16 %v1664
    %v1742 = vunpack.c.l.b16 %v1665
    %v1743 = vunpack.c.h.b16 %v1665
    %v1744 = vunpack.c.l.b16 %v1666
    %v1745 = vunpack.c.h.b16 %v1666
    %v1746 = vunpack.c.l.b16 %v1667
    %v1747 = vunpack.c.h.b16 %v1667
    %v1748 = vunpack.c.l.b16 %v1668
    %v1749 = vunpack.c.h.b16 %v1668
    %v1750 = vunpack.c.l.b16 %v1669
    %v1751 = vunpack.c.h.b16 %v1669
    %v1752 = vunpack.c.l.b16 %v1670
    %v1753 = vunpack.c.h.b16 %v1670
    %v1754 = vunpack.c.l.b16 %v1671
    %v1755 = vunpack.c.h.b16 %v1671
    %v1756 = vunpack.c.l.b16 %v1672
    %v1757 = vunpack.c.h.b16 %v1672
    %v1758 = vunpack.c.l.b16 %v1673
    %v1759 = vunpack.c.h.b16 %v1673
    %v1760 = vunpack.c.l.b16 %v1674
    %v1761 = vunpack.c.h.b16 %v1674
    %v1762 = vunpack.c.l.b16 %v1675
    %v1763 = vunpack.c.h.b16 %v1675
    %v1764 = vunpack.c.l.b16 %v1676
    %v1765 = vunpack.c.h.b16 %v1676
    %v1766 = vunpack.c.l.b16 %v1677
    %v1767 = vunpack.c.h.b16 %v1677
    %v1768 = vunpack.c.l.b16 %v1678
    %v1769 = vunpack.c.h.b16 %v1678
    %v1770 = vunpack.c.l.b16 %v1679
    %v1771 = vunpack.c.h.b16 %v1679
    %v1772 = vunpack.c.l.b16 %v1680
    %v1773 = vunpack.c.h.b16 %v1680
    %v1774 = vunpack.c.l.b16 %v1681
    %v1775 = vunpack.c.h.b16 %v1681
    %v1776 = vunpack.c.l.b16 %v1682
    %v1777 = vunpack.c.h.b16 %v1682
    %v1778 = vunpack.c.l.b16 %v1683
    %v1779 = vunpack.c.h.b16 %v1683
    %v1780 = vunpack.c.l.b16 %v1684
    %v1781 = vunpack.c.h.b16 %v1684
    %v1782 = vunpack.c.l.b16 %v1685
    %v1783 = vunpack.c.h.b16 %v1685
    %v1784 = vunpack.c.l.b16 %v1686
    %v1785 = vunpack.c.h.b16 %v1686
    %v1786 = vpack.c.b16 %v1726, %v1722
    %v1787 = vpack.c.b16 %v1727, %v1723
    %v1788 = vpack.c.b16 %v1728, %v1724
    %v1789 = vpack.c.b16 %v1729, %v1725
    %v1790 = vpack.c.b16 %v1734, %v1730
    %v1791 = vpack.c.b16 %v1735, %v1731
    %v1792 = vpack.c.b16 %v1736, %v1732
    %v1793 = vpack.c.b16 %v1737, %v1733
    %v1794 = vpack.c.b16 %v1742, %v1738
    %v1795 = vpack.c.b16 %v1743, %v1739
    %v1796 = vpack.c.b16 %v1744, %v1740
    %v1797 = vpack.c.b16 %v1745, %v1741
    %v1798 = vpack.c.b16 %v1750, %v1746
    %v1799 = vpack.c.b16 %v1751, %v1747
    %v1800 = vpack.c.b16 %v1752, %v1748
    %v1801 = vpack.c.b16 %v1753, %v1749
    %v1802 = vpack.c.b16 %v1758, %v1754
    %v1803 = vpack.c.b16 %v1759, %v1755
    %v1804 = vpack.c.b16 %v1760, %v1756
    %v1805 = vpack.c.b16 %v1761, %v1757
    %v1806 = vpack.c.b16 %v1766, %v1762
    %v1807 = vpack.c.b16 %v1767, %v1763
    %v1808 = vpack.c.b16 %v1768, %v1764
    %v1809 = vpack.c.b16 %v1769, %v1765
    %v1810 = vpack.c.b16 %v1774, %v1770
    %v1811 = vpack.c.b16 %v1775, %v1771
    %v1812 = vpack.c.b16 %v1776, %v1772
    %v1813 = vpack.c.b16 %v1777, %v1773
    %v1814 = vpack.c.b16 %v1782, %v1778
    %v1815 = vpack.c.b16 %v1783, %v1779
    %v1816 = vpack.c.b16 %v1784, %v1780
    %v1817 = vpack.c.b16 %v1785, %v1781
    %1850 = vmatpush.bf16.msra.mxu0 %v1814
    %1851 = vmatpush.bf16.msra.mxu0 %v1810
    %1852 = vmatpush.bf16.msra.mxu0 %v1806
    %1853 = vmatpush.bf16.msra.mxu0 %v1802
    %1854 = vmatpush.bf16.msra.mxu0 %v1798
    %1855 = vmatpush.bf16.msra.mxu0 %v1794
    %1856 = vmatpush.bf16.msra.mxu0 %v1790
    %1857 = vmatpush.bf16.msra.mxu0 %v1786
    %1858 = vmatmul.bf16.gmra.mxu0 %v1688
    %v1859 = vpop.f32.mrf.mxu0
    %v1860 = vadd.f32 0.0, %v1859
    %v1861 = vpop.f32.mrf.mxu0
    %1862 = vdwg.mxu0
    %1863 = vmatpush.bf16.msra.mxu0 %v1815
    %1864 = vmatpush.bf16.msra.mxu0 %v1811
    %1865 = vmatpush.bf16.msra.mxu0 %v1807
    %1866 = vmatpush.bf16.msra.mxu0 %v1803
    %1867 = vmatpush.bf16.msra.mxu0 %v1799
    %1868 = vmatpush.bf16.msra.mxu0 %v1795
    %1869 = vmatpush.bf16.msra.mxu0 %v1791
    %1870 = vmatpush.bf16.msra.mxu0 %v1787
    %1871 = vmatmul.bf16.gmra.mxu0 %v1688
    %v1872 = vpop.f32.mrf.mxu0
    %v1873 = vadd.f32 0.0, %v1872
    %v1874 = vpop.f32.mrf.mxu0
    %1875 = vdwg.mxu0
    %1876 = vmatpush.bf16.msra.mxu0 %v1816
    %1877 = vmatpush.bf16.msra.mxu0 %v1812
    %1878 = vmatpush.bf16.msra.mxu0 %v1808
    %1879 = vmatpush.bf16.msra.mxu0 %v1804
    %1880 = vmatpush.bf16.msra.mxu0 %v1800
    %1881 = vmatpush.bf16.msra.mxu0 %v1796
    %1882 = vmatpush.bf16.msra.mxu0 %v1792
    %1883 = vmatpush.bf16.msra.mxu0 %v1788
    %1884 = vmatmul.bf16.gmra.mxu0 %v1688
    %v1885 = vpop.f32.mrf.mxu0
    %v1886 = vadd.f32 0.0, %v1885
    %v1887 = vpop.f32.mrf.mxu0
    %1888 = vdwg.mxu0
    %1889 = vmatpush.bf16.msra.mxu0 %v1817
    %1890 = vmatpush.bf16.msra.mxu0 %v1813
    %1891 = vmatpush.bf16.msra.mxu0 %v1809
    %1892 = vmatpush.bf16.msra.mxu0 %v1805
    %1893 = vmatpush.bf16.msra.mxu0 %v1801
    %1894 = vmatpush.bf16.msra.mxu0 %v1797
    %1895 = vmatpush.bf16.msra.mxu0 %v1793
    %1896 = vmatpush.bf16.msra.mxu0 %v1789
    %1897 = vmatmul.bf16.gmra.mxu0 %v1688
    %v1898 = vpop.f32.mrf.mxu0
    %v1899 = vadd.f32 0.0, %v1898
    %v1900 = vpop.f32.mrf.mxu0
    %1901 = vdwg.mxu0
    %v1906 = vrot.slane %v1860, 3
    %v1907 = vrot.slane %v1873, 3
    %v1908 = vrot.slane %v1886, 3
    %v1909 = vrot.slane %v1899, 3
    %v1914 = vadd.f32 %v112, %v1906
    %v1915 = vadd.f32 %v132, %v1907
    %v1916 = vadd.f32 %v152, %v1908
    %v1917 = vadd.f32 %v172, %v1909
    %v1918 = vmul.f32 %v1914, 0.5
    %v1919 = vtanh.pop %v1918
    %v1920 = vadd.f32 %v1919, 1.0
    %v1921 = vmul.f32 %v1920, 0.5
    %v1922 = vmul.f32 %v1915, 0.5
    %v1923 = vtanh.pop %v1922
    %v1924 = vadd.f32 %v1923, 1.0
    %v1925 = vmul.f32 %v1924, 0.5
    %v1926 = vtanh.pop %v1916
    %v1927 = vmul.f32 %v1917, 0.5
    %v1928 = vtanh.pop %v1927
    %v1929 = vadd.f32 %v1928, 1.0
    %v1930 = vmul.f32 %v1929, 0.5
    %v1932 = vrot.slane %v1635, 7
    %v1934 = vmul.f32 %v1925, %v1932
    %v1935 = vmul.f32 %v1921, %v1926
    %v1936 = vadd.f32 %v1934, %v1935
    %v1937 = vtanh.pop %v1936
    %v1938 = vmul.f32 %v1930, %v1937
    %v1939 = vld [vmem:[%s4] sm:$0x1]
    %v1941 = vperm.slane %v1939, 0
    %v1943 = vmul.f32 %v1938, %v1941
    %vm1944 = vcmask 1045509
    %v1945 = vsel %vm1944, %v1943, 0.0
    %1946 = vadd.xlane.f32.xlu0 %v1945
    %v1947 = vpop.xlane.xlu0 %1946
    %v1948 = vld [vmem:[#allocation2] sm:$0x1]
    %v1950 = vperm.slane %v1948, 0
    %v1952 = vadd.f32 %v1947, %v1950
    %vm1953 = vcmask 5125
    %1954 = vst.msk [vmem:[%s6] sm:$0x20] %vm1953, %v1952
    %v1955 = vpack.c.bf16 %v1938, %v1938
    %v1956 = vld [vmem:[#allocation7] sm:$0xff]
    %v1957 = vld [vmem:[#allocation7 + $0x8] sm:$0xff]
    %v1958 = vld [vmem:[#allocation7 + $0x10] sm:$0xff]
    %v1959 = vld [vmem:[#allocation7 + $0x18] sm:$0xff]
    %v1960 = vld [vmem:[#allocation7 + $0x20] sm:$0xff]
    %v1961 = vld [vmem:[#allocation7 + $0x28] sm:$0xff]
    %v1962 = vld [vmem:[#allocation7 + $0x30] sm:$0xff]
    %v1963 = vld [vmem:[#allocation7 + $0x38] sm:$0xff]
    %v1964 = vld [vmem:[#allocation7 + $0x40] sm:$0xff]
    %v1965 = vld [vmem:[#allocation7 + $0x48] sm:$0xff]
    %v1966 = vld [vmem:[#allocation7 + $0x50] sm:$0xff]
    %v1967 = vld [vmem:[#allocation7 + $0x58] sm:$0xff]
    %v1968 = vld [vmem:[#allocation7 + $0x60] sm:$0xff]
    %v1969 = vld [vmem:[#allocation7 + $0x68] sm:$0xff]
    %v1970 = vld [vmem:[#allocation7 + $0x70] sm:$0xff]
    %v1971 = vld [vmem:[#allocation7 + $0x78] sm:$0xff]
    %v1972 = vld [vmem:[#allocation7 + $0x80] sm:$0xff]
    %v1973 = vld [vmem:[#allocation7 + $0x88] sm:$0xff]
    %v1974 = vld [vmem:[#allocation7 + $0x90] sm:$0xff]
    %v1975 = vld [vmem:[#allocation7 + $0x98] sm:$0xff]
    %v1976 = vld [vmem:[#allocation7 + $0xa0] sm:$0xff]
    %v1977 = vld [vmem:[#allocation7 + $0xa8] sm:$0xff]
    %v1978 = vld [vmem:[#allocation7 + $0xb0] sm:$0xff]
    %v1979 = vld [vmem:[#allocation7 + $0xb8] sm:$0xff]
    %v1980 = vld [vmem:[#allocation7 + $0xc0] sm:$0xff]
    %v1981 = vld [vmem:[#allocation7 + $0xc8] sm:$0xff]
    %v1982 = vld [vmem:[#allocation7 + $0xd0] sm:$0xff]
    %v1983 = vld [vmem:[#allocation7 + $0xd8] sm:$0xff]
    %v1984 = vld [vmem:[#allocation7 + $0xe0] sm:$0xff]
    %v1985 = vld [vmem:[#allocation7 + $0xe8] sm:$0xff]
    %v1986 = vld [vmem:[#allocation7 + $0xf0] sm:$0xff]
    %v1987 = vld [vmem:[#allocation7 + $0xf8] sm:$0xff]
    %v1989 = vshrl.u32 %v1955, 16
    %v1991 = vrot.slane %v1989, 2
    %v2025 = vunpack.c.l.b16 %v1956
    %v2026 = vunpack.c.h.b16 %v1956
    %v2027 = vunpack.c.l.b16 %v1957
    %v2028 = vunpack.c.h.b16 %v1957
    %v2029 = vunpack.c.l.b16 %v1958
    %v2030 = vunpack.c.h.b16 %v1958
    %v2031 = vunpack.c.l.b16 %v1959
    %v2032 = vunpack.c.h.b16 %v1959
    %v2033 = vunpack.c.l.b16 %v1960
    %v2034 = vunpack.c.h.b16 %v1960
    %v2035 = vunpack.c.l.b16 %v1961
    %v2036 = vunpack.c.h.b16 %v1961
    %v2037 = vunpack.c.l.b16 %v1962
    %v2038 = vunpack.c.h.b16 %v1962
    %v2039 = vunpack.c.l.b16 %v1963
    %v2040 = vunpack.c.h.b16 %v1963
    %v2041 = vunpack.c.l.b16 %v1964
    %v2042 = vunpack.c.h.b16 %v1964
    %v2043 = vunpack.c.l.b16 %v1965
    %v2044 = vunpack.c.h.b16 %v1965
    %v2045 = vunpack.c.l.b16 %v1966
    %v2046 = vunpack.c.h.b16 %v1966
    %v2047 = vunpack.c.l.b16 %v1967
    %v2048 = vunpack.c.h.b16 %v1967
    %v2049 = vunpack.c.l.b16 %v1968
    %v2050 = vunpack.c.h.b16 %v1968
    %v2051 = vunpack.c.l.b16 %v1969
    %v2052 = vunpack.c.h.b16 %v1969
    %v2053 = vunpack.c.l.b16 %v1970
    %v2054 = vunpack.c.h.b16 %v1970
    %v2055 = vunpack.c.l.b16 %v1971
    %v2056 = vunpack.c.h.b16 %v1971
    %v2057 = vunpack.c.l.b16 %v1972
    %v2058 = vunpack.c.h.b16 %v1972
    %v2059 = vunpack.c.l.b16 %v1973
    %v2060 = vunpack.c.h.b16 %v1973
    %v2061 = vunpack.c.l.b16 %v1974
    %v2062 = vunpack.c.h.b16 %v1974
    %v2063 = vunpack.c.l.b16 %v1975
    %v2064 = vunpack.c.h.b16 %v1975
    %v2065 = vunpack.c.l.b16 %v1976
    %v2066 = vunpack.c.h.b16 %v1976
    %v2067 = vunpack.c.l.b16 %v1977
    %v2068 = vunpack.c.h.b16 %v1977
    %v2069 = vunpack.c.l.b16 %v1978
    %v2070 = vunpack.c.h.b16 %v1978
    %v2071 = vunpack.c.l.b16 %v1979
    %v2072 = vunpack.c.h.b16 %v1979
    %v2073 = vunpack.c.l.b16 %v1980
    %v2074 = vunpack.c.h.b16 %v1980
    %v2075 = vunpack.c.l.b16 %v1981
    %v2076 = vunpack.c.h.b16 %v1981
    %v2077 = vunpack.c.l.b16 %v1982
    %v2078 = vunpack.c.h.b16 %v1982
    %v2079 = vunpack.c.l.b16 %v1983
    %v2080 = vunpack.c.h.b16 %v1983
    %v2081 = vunpack.c.l.b16 %v1984
    %v2082 = vunpack.c.h.b16 %v1984
    %v2083 = vunpack.c.l.b16 %v1985
    %v2084 = vunpack.c.h.b16 %v1985
    %v2085 = vunpack.c.l.b16 %v1986
    %v2086 = vunpack.c.h.b16 %v1986
    %v2087 = vunpack.c.l.b16 %v1987
    %v2088 = vunpack.c.h.b16 %v1987
    %v2089 = vpack.c.b16 %v2029, %v2025
    %v2090 = vpack.c.b16 %v2030, %v2026
    %v2091 = vpack.c.b16 %v2031, %v2027
    %v2092 = vpack.c.b16 %v2032, %v2028
    %v2093 = vpack.c.b16 %v2037, %v2033
    %v2094 = vpack.c.b16 %v2038, %v2034
    %v2095 = vpack.c.b16 %v2039, %v2035
    %v2096 = vpack.c.b16 %v2040, %v2036
    %v2097 = vpack.c.b16 %v2045, %v2041
    %v2098 = vpack.c.b16 %v2046, %v2042
    %v2099 = vpack.c.b16 %v2047, %v2043
    %v2100 = vpack.c.b16 %v2048, %v2044
    %v2101 = vpack.c.b16 %v2053, %v2049
    %v2102 = vpack.c.b16 %v2054, %v2050
    %v2103 = vpack.c.b16 %v2055, %v2051
    %v2104 = vpack.c.b16 %v2056, %v2052
    %v2105 = vpack.c.b16 %v2061, %v2057
    %v2106 = vpack.c.b16 %v2062, %v2058
    %v2107 = vpack.c.b16 %v2063, %v2059
    %v2108 = vpack.c.b16 %v2064, %v2060
    %v2109 = vpack.c.b16 %v2069, %v2065
    %v2110 = vpack.c.b16 %v2070, %v2066
    %v2111 = vpack.c.b16 %v2071, %v2067
    %v2112 = vpack.c.b16 %v2072, %v2068
    %v2113 = vpack.c.b16 %v2077, %v2073
    %v2114 = vpack.c.b16 %v2078, %v2074
    %v2115 = vpack.c.b16 %v2079, %v2075
    %v2116 = vpack.c.b16 %v2080, %v2076
    %v2117 = vpack.c.b16 %v2085, %v2081
    %v2118 = vpack.c.b16 %v2086, %v2082
    %v2119 = vpack.c.b16 %v2087, %v2083
    %v2120 = vpack.c.b16 %v2088, %v2084
    %2153 = vmatpush.bf16.msra.mxu0 %v2117
    %2154 = vmatpush.bf16.msra.mxu0 %v2113
    %2155 = vmatpush.bf16.msra.mxu0 %v2109
    %2156 = vmatpush.bf16.msra.mxu0 %v2105
    %2157 = vmatpush.bf16.msra.mxu0 %v2101
    %2158 = vmatpush.bf16.msra.mxu0 %v2097
    %2159 = vmatpush.bf16.msra.mxu0 %v2093
    %2160 = vmatpush.bf16.msra.mxu0 %v2089
    %2161 = vmatmul.bf16.gmra.mxu0 %v1991
    %v2162 = vpop.f32.mrf.mxu0
    %v2163 = vadd.f32 0.0, %v2162
    %v2164 = vpop.f32.mrf.mxu0
    %2165 = vdwg.mxu0
    %2166 = vmatpush.bf16.msra.mxu0 %v2118
    %2167 = vmatpush.bf16.msra.mxu0 %v2114
    %2168 = vmatpush.bf16.msra.mxu0 %v2110
    %2169 = vmatpush.bf16.msra.mxu0 %v2106
    %2170 = vmatpush.bf16.msra.mxu0 %v2102
    %2171 = vmatpush.bf16.msra.mxu0 %v2098
    %2172 = vmatpush.bf16.msra.mxu0 %v2094
    %2173 = vmatpush.bf16.msra.mxu0 %v2090
    %2174 = vmatmul.bf16.gmra.mxu0 %v1991
    %v2175 = vpop.f32.mrf.mxu0
    %v2176 = vadd.f32 0.0, %v2175
    %v2177 = vpop.f32.mrf.mxu0
    %2178 = vdwg.mxu0
    %2179 = vmatpush.bf16.msra.mxu0 %v2119
    %2180 = vmatpush.bf16.msra.mxu0 %v2115
    %2181 = vmatpush.bf16.msra.mxu0 %v2111
    %2182 = vmatpush.bf16.msra.mxu0 %v2107
    %2183 = vmatpush.bf16.msra.mxu0 %v2103
    %2184 = vmatpush.bf16.msra.mxu0 %v2099
    %2185 = vmatpush.bf16.msra.mxu0 %v2095
    %2186 = vmatpush.bf16.msra.mxu0 %v2091
    %2187 = vmatmul.bf16.gmra.mxu0 %v1991
    %v2188 = vpop.f32.mrf.mxu0
    %v2189 = vadd.f32 0.0, %v2188
    %v2190 = vpop.f32.mrf.mxu0
    %2191 = vdwg.mxu0
    %2192 = vmatpush.bf16.msra.mxu0 %v2120
    %2193 = vmatpush.bf16.msra.mxu0 %v2116
    %2194 = vmatpush.bf16.msra.mxu0 %v2112
    %2195 = vmatpush.bf16.msra.mxu0 %v2108
    %2196 = vmatpush.bf16.msra.mxu0 %v2104
    %2197 = vmatpush.bf16.msra.mxu0 %v2100
    %2198 = vmatpush.bf16.msra.mxu0 %v2096
    %2199 = vmatpush.bf16.msra.mxu0 %v2092
    %2200 = vmatmul.bf16.gmra.mxu0 %v1991
    %v2201 = vpop.f32.mrf.mxu0
    %v2202 = vadd.f32 0.0, %v2201
    %v2203 = vpop.f32.mrf.mxu0
    %2204 = vdwg.mxu0
    %v2209 = vrot.slane %v2163, 2
    %v2210 = vrot.slane %v2176, 2
    %v2211 = vrot.slane %v2189, 2
    %v2212 = vrot.slane %v2202, 2
    %v2217 = vadd.f32 %v112, %v2209
    %v2218 = vadd.f32 %v132, %v2210
    %v2219 = vadd.f32 %v152, %v2211
    %v2220 = vadd.f32 %v172, %v2212
    %v2221 = vmul.f32 %v2217, 0.5
    %v2222 = vtanh.pop %v2221
    %v2223 = vadd.f32 %v2222, 1.0
    %v2224 = vmul.f32 %v2223, 0.5
    %v2225 = vmul.f32 %v2218, 0.5
    %v2226 = vtanh.pop %v2225
    %v2227 = vadd.f32 %v2226, 1.0
    %v2228 = vmul.f32 %v2227, 0.5
    %v2229 = vtanh.pop %v2219
    %v2230 = vmul.f32 %v2220, 0.5
    %v2231 = vtanh.pop %v2230
    %v2232 = vadd.f32 %v2231, 1.0
    %v2233 = vmul.f32 %v2232, 0.5
    %v2235 = vrot.slane %v1936, 7
    %v2237 = vmul.f32 %v2228, %v2235
    %v2238 = vmul.f32 %v2224, %v2229
    %v2239 = vadd.f32 %v2237, %v2238
    %v2240 = vtanh.pop %v2239
    %v2241 = vmul.f32 %v2233, %v2240
    %v2242 = vld [vmem:[%s4] sm:$0x1]
    %v2244 = vperm.slane %v2242, 0
    %v2246 = vmul.f32 %v2241, %v2244
    %vm2247 = vcmask 1046534
    %v2248 = vsel %vm2247, %v2246, 0.0
    %2249 = vadd.xlane.f32.xlu0 %v2248
    %v2250 = vpop.xlane.xlu0 %2249
    %v2251 = vld [vmem:[#allocation2] sm:$0x1]
    %v2253 = vperm.slane %v2251, 0
    %v2255 = vadd.f32 %v2250, %v2253
    %vm2256 = vcmask 6150
    %2257 = vst.msk [vmem:[%s6] sm:$0x40] %vm2256, %v2255
    %v2258 = vpack.c.bf16 %v2241, %v2241
    %v2259 = vld [vmem:[#allocation7] sm:$0xff]
    %v2260 = vld [vmem:[#allocation7 + $0x8] sm:$0xff]
    %v2261 = vld [vmem:[#allocation7 + $0x10] sm:$0xff]
    %v2262 = vld [vmem:[#allocation7 + $0x18] sm:$0xff]
    %v2263 = vld [vmem:[#allocation7 + $0x20] sm:$0xff]
    %v2264 = vld [vmem:[#allocation7 + $0x28] sm:$0xff]
    %v2265 = vld [vmem:[#allocation7 + $0x30] sm:$0xff]
    %v2266 = vld [vmem:[#allocation7 + $0x38] sm:$0xff]
    %v2267 = vld [vmem:[#allocation7 + $0x40] sm:$0xff]
    %v2268 = vld [vmem:[#allocation7 + $0x48] sm:$0xff]
    %v2269 = vld [vmem:[#allocation7 + $0x50] sm:$0xff]
    %v2270 = vld [vmem:[#allocation7 + $0x58] sm:$0xff]
    %v2271 = vld [vmem:[#allocation7 + $0x60] sm:$0xff]
    %v2272 = vld [vmem:[#allocation7 + $0x68] sm:$0xff]
    %v2273 = vld [vmem:[#allocation7 + $0x70] sm:$0xff]
    %v2274 = vld [vmem:[#allocation7 + $0x78] sm:$0xff]
    %v2275 = vld [vmem:[#allocation7 + $0x80] sm:$0xff]
    %v2276 = vld [vmem:[#allocation7 + $0x88] sm:$0xff]
    %v2277 = vld [vmem:[#allocation7 + $0x90] sm:$0xff]
    %v2278 = vld [vmem:[#allocation7 + $0x98] sm:$0xff]
    %v2279 = vld [vmem:[#allocation7 + $0xa0] sm:$0xff]
    %v2280 = vld [vmem:[#allocation7 + $0xa8] sm:$0xff]
    %v2281 = vld [vmem:[#allocation7 + $0xb0] sm:$0xff]
    %v2282 = vld [vmem:[#allocation7 + $0xb8] sm:$0xff]
    %v2283 = vld [vmem:[#allocation7 + $0xc0] sm:$0xff]
    %v2284 = vld [vmem:[#allocation7 + $0xc8] sm:$0xff]
    %v2285 = vld [vmem:[#allocation7 + $0xd0] sm:$0xff]
    %v2286 = vld [vmem:[#allocation7 + $0xd8] sm:$0xff]
    %v2287 = vld [vmem:[#allocation7 + $0xe0] sm:$0xff]
    %v2288 = vld [vmem:[#allocation7 + $0xe8] sm:$0xff]
    %v2289 = vld [vmem:[#allocation7 + $0xf0] sm:$0xff]
    %v2290 = vld [vmem:[#allocation7 + $0xf8] sm:$0xff]
    %v2292 = vrot.slane %v2258, 3
    %v2326 = vunpack.c.l.b16 %v2259
    %v2327 = vunpack.c.h.b16 %v2259
    %v2328 = vunpack.c.l.b16 %v2260
    %v2329 = vunpack.c.h.b16 %v2260
    %v2330 = vunpack.c.l.b16 %v2261
    %v2331 = vunpack.c.h.b16 %v2261
    %v2332 = vunpack.c.l.b16 %v2262
    %v2333 = vunpack.c.h.b16 %v2262
    %v2334 = vunpack.c.l.b16 %v2263
    %v2335 = vunpack.c.h.b16 %v2263
    %v2336 = vunpack.c.l.b16 %v2264
    %v2337 = vunpack.c.h.b16 %v2264
    %v2338 = vunpack.c.l.b16 %v2265
    %v2339 = vunpack.c.h.b16 %v2265
    %v2340 = vunpack.c.l.b16 %v2266
    %v2341 = vunpack.c.h.b16 %v2266
    %v2342 = vunpack.c.l.b16 %v2267
    %v2343 = vunpack.c.h.b16 %v2267
    %v2344 = vunpack.c.l.b16 %v2268
    %v2345 = vunpack.c.h.b16 %v2268
    %v2346 = vunpack.c.l.b16 %v2269
    %v2347 = vunpack.c.h.b16 %v2269
    %v2348 = vunpack.c.l.b16 %v2270
    %v2349 = vunpack.c.h.b16 %v2270
    %v2350 = vunpack.c.l.b16 %v2271
    %v2351 = vunpack.c.h.b16 %v2271
    %v2352 = vunpack.c.l.b16 %v2272
    %v2353 = vunpack.c.h.b16 %v2272
    %v2354 = vunpack.c.l.b16 %v2273
    %v2355 = vunpack.c.h.b16 %v2273
    %v2356 = vunpack.c.l.b16 %v2274
    %v2357 = vunpack.c.h.b16 %v2274
    %v2358 = vunpack.c.l.b16 %v2275
    %v2359 = vunpack.c.h.b16 %v2275
    %v2360 = vunpack.c.l.b16 %v2276
    %v2361 = vunpack.c.h.b16 %v2276
    %v2362 = vunpack.c.l.b16 %v2277
    %v2363 = vunpack.c.h.b16 %v2277
    %v2364 = vunpack.c.l.b16 %v2278
    %v2365 = vunpack.c.h.b16 %v2278
    %v2366 = vunpack.c.l.b16 %v2279
    %v2367 = vunpack.c.h.b16 %v2279
    %v2368 = vunpack.c.l.b16 %v2280
    %v2369 = vunpack.c.h.b16 %v2280
    %v2370 = vunpack.c.l.b16 %v2281
    %v2371 = vunpack.c.h.b16 %v2281
    %v2372 = vunpack.c.l.b16 %v2282
    %v2373 = vunpack.c.h.b16 %v2282
    %v2374 = vunpack.c.l.b16 %v2283
    %v2375 = vunpack.c.h.b16 %v2283
    %v2376 = vunpack.c.l.b16 %v2284
    %v2377 = vunpack.c.h.b16 %v2284
    %v2378 = vunpack.c.l.b16 %v2285
    %v2379 = vunpack.c.h.b16 %v2285
    %v2380 = vunpack.c.l.b16 %v2286
    %v2381 = vunpack.c.h.b16 %v2286
    %v2382 = vunpack.c.l.b16 %v2287
    %v2383 = vunpack.c.h.b16 %v2287
    %v2384 = vunpack.c.l.b16 %v2288
    %v2385 = vunpack.c.h.b16 %v2288
    %v2386 = vunpack.c.l.b16 %v2289
    %v2387 = vunpack.c.h.b16 %v2289
    %v2388 = vunpack.c.l.b16 %v2290
    %v2389 = vunpack.c.h.b16 %v2290
    %v2390 = vpack.c.b16 %v2330, %v2326
    %v2391 = vpack.c.b16 %v2331, %v2327
    %v2392 = vpack.c.b16 %v2332, %v2328
    %v2393 = vpack.c.b16 %v2333, %v2329
    %v2394 = vpack.c.b16 %v2338, %v2334
    %v2395 = vpack.c.b16 %v2339, %v2335
    %v2396 = vpack.c.b16 %v2340, %v2336
    %v2397 = vpack.c.b16 %v2341, %v2337
    %v2398 = vpack.c.b16 %v2346, %v2342
    %v2399 = vpack.c.b16 %v2347, %v2343
    %v2400 = vpack.c.b16 %v2348, %v2344
    %v2401 = vpack.c.b16 %v2349, %v2345
    %v2402 = vpack.c.b16 %v2354, %v2350
    %v2403 = vpack.c.b16 %v2355, %v2351
    %v2404 = vpack.c.b16 %v2356, %v2352
    %v2405 = vpack.c.b16 %v2357, %v2353
    %v2406 = vpack.c.b16 %v2362, %v2358
    %v2407 = vpack.c.b16 %v2363, %v2359
    %v2408 = vpack.c.b16 %v2364, %v2360
    %v2409 = vpack.c.b16 %v2365, %v2361
    %v2410 = vpack.c.b16 %v2370, %v2366
    %v2411 = vpack.c.b16 %v2371, %v2367
    %v2412 = vpack.c.b16 %v2372, %v2368
    %v2413 = vpack.c.b16 %v2373, %v2369
    %v2414 = vpack.c.b16 %v2378, %v2374
    %v2415 = vpack.c.b16 %v2379, %v2375
    %v2416 = vpack.c.b16 %v2380, %v2376
    %v2417 = vpack.c.b16 %v2381, %v2377
    %v2418 = vpack.c.b16 %v2386, %v2382
    %v2419 = vpack.c.b16 %v2387, %v2383
    %v2420 = vpack.c.b16 %v2388, %v2384
    %v2421 = vpack.c.b16 %v2389, %v2385
    %2454 = vmatpush.bf16.msra.mxu0 %v2418
    %2455 = vmatpush.bf16.msra.mxu0 %v2414
    %2456 = vmatpush.bf16.msra.mxu0 %v2410
    %2457 = vmatpush.bf16.msra.mxu0 %v2406
    %2458 = vmatpush.bf16.msra.mxu0 %v2402
    %2459 = vmatpush.bf16.msra.mxu0 %v2398
    %2460 = vmatpush.bf16.msra.mxu0 %v2394
    %2461 = vmatpush.bf16.msra.mxu0 %v2390
    %2462 = vmatmul.bf16.gmra.mxu0 %v2292
    %v2463 = vpop.f32.mrf.mxu0
    %v2464 = vadd.f32 0.0, %v2463
    %v2465 = vpop.f32.mrf.mxu0
    %2466 = vdwg.mxu0
    %2467 = vmatpush.bf16.msra.mxu0 %v2419
    %2468 = vmatpush.bf16.msra.mxu0 %v2415
    %2469 = vmatpush.bf16.msra.mxu0 %v2411
    %2470 = vmatpush.bf16.msra.mxu0 %v2407
    %2471 = vmatpush.bf16.msra.mxu0 %v2403
    %2472 = vmatpush.bf16.msra.mxu0 %v2399
    %2473 = vmatpush.bf16.msra.mxu0 %v2395
    %2474 = vmatpush.bf16.msra.mxu0 %v2391
    %2475 = vmatmul.bf16.gmra.mxu0 %v2292
    %v2476 = vpop.f32.mrf.mxu0
    %v2477 = vadd.f32 0.0, %v2476
    %v2478 = vpop.f32.mrf.mxu0
    %2479 = vdwg.mxu0
    %2480 = vmatpush.bf16.msra.mxu0 %v2420
    %2481 = vmatpush.bf16.msra.mxu0 %v2416
    %2482 = vmatpush.bf16.msra.mxu0 %v2412
    %2483 = vmatpush.bf16.msra.mxu0 %v2408
    %2484 = vmatpush.bf16.msra.mxu0 %v2404
    %2485 = vmatpush.bf16.msra.mxu0 %v2400
    %2486 = vmatpush.bf16.msra.mxu0 %v2396
    %2487 = vmatpush.bf16.msra.mxu0 %v2392
    %2488 = vmatmul.bf16.gmra.mxu0 %v2292
    %v2489 = vpop.f32.mrf.mxu0
    %v2490 = vadd.f32 0.0, %v2489
    %v2491 = vpop.f32.mrf.mxu0
    %2492 = vdwg.mxu0
    %2493 = vmatpush.bf16.msra.mxu0 %v2421
    %2494 = vmatpush.bf16.msra.mxu0 %v2417
    %2495 = vmatpush.bf16.msra.mxu0 %v2413
    %2496 = vmatpush.bf16.msra.mxu0 %v2409
    %2497 = vmatpush.bf16.msra.mxu0 %v2405
    %2498 = vmatpush.bf16.msra.mxu0 %v2401
    %2499 = vmatpush.bf16.msra.mxu0 %v2397
    %2500 = vmatpush.bf16.msra.mxu0 %v2393
    %2501 = vmatmul.bf16.gmra.mxu0 %v2292
    %v2502 = vpop.f32.mrf.mxu0
    %v2503 = vadd.f32 0.0, %v2502
    %v2504 = vpop.f32.mrf.mxu0
    %2505 = vdwg.mxu0
    %v2510 = vrot.slane %v2464, 1
    %v2511 = vrot.slane %v2477, 1
    %v2512 = vrot.slane %v2490, 1
    %v2513 = vrot.slane %v2503, 1
    %v2518 = vadd.f32 %v112, %v2510
    %v2519 = vadd.f32 %v132, %v2511
    %v2520 = vadd.f32 %v152, %v2512
    %v2521 = vadd.f32 %v172, %v2513
    %v2522 = vmul.f32 %v2518, 0.5
    %v2523 = vtanh.pop %v2522
    %v2524 = vadd.f32 %v2523, 1.0
    %v2525 = vmul.f32 %v2524, 0.5
    %v2526 = vmul.f32 %v2519, 0.5
    %v2527 = vtanh.pop %v2526
    %v2528 = vadd.f32 %v2527, 1.0
    %v2529 = vmul.f32 %v2528, 0.5
    %v2530 = vtanh.pop %v2520
    %v2531 = vmul.f32 %v2521, 0.5
    %v2532 = vtanh.pop %v2531
    %v2533 = vadd.f32 %v2532, 1.0
    %v2534 = vmul.f32 %v2533, 0.5
    %v2536 = vrot.slane %v2239, 7
    %v2538 = vmul.f32 %v2529, %v2536
    %v2539 = vmul.f32 %v2525, %v2530
    %v2540 = vadd.f32 %v2538, %v2539
    %v2541 = vtanh.pop %v2540
    %v2542 = vmul.f32 %v2534, %v2541
    %v2543 = vld [vmem:[%s4] sm:$0x1]
    %v2545 = vperm.slane %v2543, 0
    %v2547 = vmul.f32 %v2542, %v2545
    %vm2548 = vcmask 1047559
    %v2549 = vsel %vm2548, %v2547, 0.0
    %2550 = vadd.xlane.f32.xlu0 %v2549
    %v2551 = vpop.xlane.xlu0 %2550
    %v2552 = vld [vmem:[#allocation2] sm:$0x1]
    %v2554 = vperm.slane %v2552, 0
    %v2556 = vadd.f32 %v2551, %v2554
    %vm2557 = vcmask 7175
    %2558 = vst.msk [vmem:[%s6] sm:$0x80] %vm2557, %v2556
    // Predicated region
    $region38: #{tpu_custom_call.1} parent=1 // pred_check
      _
    $region39: #{tpu_custom_call.1} parent=1 // pred_check_branch
      %2560 = sbr.rel (0) target = $region41
    $region40: #{tpu_custom_call.1} parent=1 // pred_region
      _
    $region41: #{tpu_custom_call.1} parent=1 // pred_fallthru
      _
    // Predicated region
    $region42: #{tpu_custom_call.1} parent=1 // pred_check
      _
    $region43: #{tpu_custom_call.1} parent=1 // pred_check_branch
      %2562 = sbr.rel (0) target = $region45
    $region44: #{tpu_custom_call.1} parent=1 // pred_region
      _
    $region45: #{tpu_custom_call.1} parent=1 // pred_fallthru
      _
    %2563 = vsyncpa [#allocation4], 1
    %2564 = vsyncpa [#allocation6], 1

</llo_original>
